<compile_context>
chip_gen: v6e
topology: v6e:2x2x1
jax: 0.10.0
libtpu: 0.0.40
codegen_flags: <defaults>
</compile_context>

<pallas_src>
import jax
import jax.numpy as jnp
from jax import lax
from jax.experimental import pallas as pl
from jax.experimental.pallas import tpu as pltpu


# ---------------------------------------------------------------------------
# Wrapper + kernel (kernel is a closure so T, B, H are Python constants)
# ---------------------------------------------------------------------------
def lstm_model_forward(x_bti, params):
    """x_bti: (B, T, I) float32 (PyTorch batch_first layout)."""
    B, T, I = x_bti.shape
    H = params["whh0"].shape[1]
    O = params["wfc"].shape[0]

    # time-major, flattened to (T*B, I) so the hoisted layer-0 projection is
    # a single matmul; row t*B + b == (time t, batch b).
    x_flat = jnp.transpose(x_bti, (1, 0, 2)).reshape(T * B, I)

    # pre-transpose / fuse weights so the hot path is (B, K) @ (K, 4H)
    wih0_t = params["wih0"].T                                   # (I, 4H)
    whh0_t = params["whh0"].T                                   # (H, 4H)
    b0 = (params["bih0"] + params["bhh0"]).reshape(1, 4 * H)    # (1, 4H)
    # layer 1: fused [Wih1; Whh1] so one K=2H matmul per step
    w1_cat = jnp.concatenate([params["wih1"].T, params["whh1"].T], axis=0)  # (2H, 4H)
    b1 = (params["bih1"] + params["bhh1"]).reshape(1, 4 * H)    # (1, 4H)
    wfc_t = params["wfc"].T                                     # (H, O)
    bfc = params["bfc"].reshape(1, O)                           # (1, O)

    def kernel(x_ref,                       # (T*B, I)
               wih0_ref, whh0_ref, b0_ref,  # (I,4H), (H,4H), (1,4H)
               w1_ref, b1_ref,              # (2H,4H), (1,4H)
               wfc_ref, bfc_ref,            # (H,O), (1,O)
               out_ref,                     # (B, O)
               xp_sc):                      # scratch: (T*B, 4H)
        # ---- hoisted layer-0 input projection for ALL time steps (1 MXU call)
        xp_sc[...] = (jnp.dot(x_ref[...], wih0_ref[...],
                              preferred_element_type=jnp.float32)
                      + b0_ref[...])

        whh0 = whh0_ref[...]
        w1 = w1_ref[...]
        b1v = b1_ref[...]

        def gate_split(gates):
            # PyTorch gate order: [i | f | g | o]
            i = jax.nn.sigmoid(gates[:, 0 * H:1 * H])
            f = jax.nn.sigmoid(gates[:, 1 * H:2 * H])
            g = jnp.tanh(gates[:, 2 * H:3 * H])
            o = jax.nn.sigmoid(gates[:, 3 * H:4 * H])
            return i, f, g, o

        def step(t, carry):
            h0, c0, h1, c1 = carry
            row = pl.multiple_of(t * B, B)            # sublane-aligned start
            xproj = xp_sc[pl.ds(row, B), :]           # (B, 4H), bias included

            # ---- layer 0: recurrent part only (input part hoisted) ----
            g0 = xproj + jnp.dot(h0, whh0, preferred_element_type=jnp.float32)
            i0, f0, gg0, o0 = gate_split(g0)
            c0 = f0 * c0 + i0 * gg0
            h0 = o0 * jnp.tanh(c0)

            # ---- layer 1: fused [x | h] @ [Wih; Whh] ----
            inp1 = jnp.concatenate([h0, h1], axis=-1)             # (B, 2H)
            g1 = jnp.dot(inp1, w1, preferred_element_type=jnp.float32) + b1v
            i1, f1, gg1, o1 = gate_split(g1)
            c1 = f1 * c1 + i1 * gg1
            h1 = o1 * jnp.tanh(c1)
            return h0, c0, h1, c1

        zeros = jnp.zeros((B, H), jnp.float32)
        _, _, h1, _ = lax.fori_loop(0, T, step, (zeros, zeros, zeros, zeros),
                                    unroll=True)

        # dropout(identity at inference) -> fc on last hidden of top layer
        out_ref[...] = (jnp.dot(h1, wfc_ref[...],
                                preferred_element_type=jnp.float32)
                        + bfc_ref[...])

    def full(a):
        nd = a.ndim
        return pl.BlockSpec(a.shape, lambda i, _nd=nd: (0,) * _nd)

    args = (x_flat, wih0_t, whh0_t, b0, w1_cat, b1, wfc_t, bfc)

    grid_spec = pltpu.PrefetchScalarGridSpec(
        num_scalar_prefetch=0,
        grid=(1,),                                   # single invocation
        in_specs=[full(a) for a in args],
        out_specs=pl.BlockSpec((B, O), lambda i: (0, 0)),
        scratch_shapes=[pltpu.VMEM((T * B, 4 * H), jnp.float32)],
    )

    return pl.pallas_call(
        kernel,
        out_shape=jax.ShapeDtypeStruct((B, O), jnp.float32),
        grid_spec=grid_spec,
        compiler_params=pltpu.CompilerParams(
            dimension_semantics=("arbitrary",)),
    )(*args)


# ---------------------------------------------------------------------------
# Pure-JAX reference (mirrors torch.nn.LSTM + Linear, eval-mode dropout)
# ---------------------------------------------------------------------------
def lstm_model_ref(x_bti, params):
    B, T, I = x_bti.shape
    H = params["whh0"].shape[1]

    def cell(inp, h, c, wih, whh, bih, bhh):
        gates = inp @ wih.T + bih + h @ whh.T + bhh
        i = jax.nn.sigmoid(gates[:, 0 * H:1 * H])
        f = jax.nn.sigmoid(gates[:, 1 * H:2 * H])
        g = jnp.tanh(gates[:, 2 * H:3 * H])
        o = jax.nn.sigmoid(gates[:, 3 * H:4 * H])
        c_new = f * c + i * g
        return o * jnp.tanh(c_new), c_new

    h0 = jnp.zeros((B, H)); c0 = jnp.zeros((B, H))
    h1 = jnp.zeros((B, H)); c1 = jnp.zeros((B, H))
    for t in range(T):
        x_t = x_bti[:, t, :]
        h0, c0 = cell(x_t, h0, c0, params["wih0"], params["whh0"],
                      params["bih0"], params["bhh0"])
        h1, c1 = cell(h0, h1, c1, params["wih1"], params["whh1"],
                      params["bih1"], params["bhh1"])
    return h1 @ params["wfc"].T + params["bfc"]


# ---------------------------------------------------------------------------
# Main
# ---------------------------------------------------------------------------
if __name__ == "__main__":
    # small shapes consistent with the module
    B, T = 8, 8               # batch, sequence length
    I, H, O = 16, 32, 4       # input_size, hidden_size, output_size (num_layers=2)

    key = jax.random.PRNGKey(0)
    keys = jax.random.split(key, 12)
    s = 0.1  # small deterministic init scale

    params = {
        "wih0": s * jax.random.normal(keys[0], (4 * H, I), jnp.float32),
        "whh0": s * jax.random.normal(keys[1], (4 * H, H), jnp.float32),
        "bih0": s * jax.random.normal(keys[2], (4 * H,), jnp.float32),
        "bhh0": s * jax.random.normal(keys[3], (4 * H,), jnp.float32),
        "wih1": s * jax.random.normal(keys[4], (4 * H, H), jnp.float32),
        "whh1": s * jax.random.normal(keys[5], (4 * H, H), jnp.float32),
        "bih1": s * jax.random.normal(keys[6], (4 * H,), jnp.float32),
        "bhh1": s * jax.random.normal(keys[7], (4 * H,), jnp.float32),
        "wfc":  s * jax.random.normal(keys[8], (O, H), jnp.float32),
        "bfc":  s * jax.random.normal(keys[9], (O,), jnp.float32),
    }
    x = jax.random.normal(keys[10], (B, T, I), jnp.float32)

    out = lstm_model_forward(x, params)
    out = jax.block_until_ready(out)

    ref = lstm_model_ref(x, params)
    assert out.shape == (B, O)
    assert jnp.allclose(out, ref, atol=1e-4, rtol=1e-4), (
        f"max abs err = {jnp.max(jnp.abs(out - ref))}")

    print("KERNEL_OK")
</pallas_src>

<mosaic_0001>
module attributes {stable_mosaic.version = 11 : i64} {
  func.func @kernel(%arg0: i32, %arg1: memref<64x16xf32, #tpu.memory_space<vmem>>, %arg2: memref<16x128xf32, #tpu.memory_space<vmem>>, %arg3: memref<32x128xf32, #tpu.memory_space<vmem>>, %arg4: memref<1x128xf32, #tpu.memory_space<vmem>>, %arg5: memref<64x128xf32, #tpu.memory_space<vmem>>, %arg6: memref<1x128xf32, #tpu.memory_space<vmem>>, %arg7: memref<32x4xf32, #tpu.memory_space<vmem>>, %arg8: memref<1x4xf32, #tpu.memory_space<vmem>>, %arg9: memref<8x4xf32, #tpu.memory_space<vmem>>, %arg10: memref<64x128xf32, #tpu.memory_space<vmem>>) attributes {dimension_semantics = [#tpu.dimension_semantics<arbitrary>], iteration_bounds = array<i64: 1>, scalar_prefetch = 0 : i64, scratch_operands = 1 : i64, tpu.core_type = #tpu.core_type<tc>, window_params = [{pipeline_mode = #tpu.pipeline_mode<synchronous>, transform_indices = @transform_0, window_bounds = array<i64: 64, 16>}, {pipeline_mode = #tpu.pipeline_mode<synchronous>, transform_indices = @transform_1, window_bounds = array<i64: 16, 128>}, {pipeline_mode = #tpu.pipeline_mode<synchronous>, transform_indices = @transform_2, window_bounds = array<i64: 32, 128>}, {pipeline_mode = #tpu.pipeline_mode<synchronous>, transform_indices = @transform_3, window_bounds = array<i64: 1, 128>}, {pipeline_mode = #tpu.pipeline_mode<synchronous>, transform_indices = @transform_4, window_bounds = array<i64: 64, 128>}, {pipeline_mode = #tpu.pipeline_mode<synchronous>, transform_indices = @transform_5, window_bounds = array<i64: 1, 128>}, {pipeline_mode = #tpu.pipeline_mode<synchronous>, transform_indices = @transform_6, window_bounds = array<i64: 32, 4>}, {pipeline_mode = #tpu.pipeline_mode<synchronous>, transform_indices = @transform_7, window_bounds = array<i64: 1, 4>}, {pipeline_mode = #tpu.pipeline_mode<synchronous>, transform_indices = @transform_8, window_bounds = array<i64: 8, 4>}]} {
    %c0 = arith.constant 0 : index
    %c0_0 = arith.constant 0 : index
    %0 = vector.load %arg1[%c0, %c0_0] : memref<64x16xf32, #tpu.memory_space<vmem>>, vector<64x16xf32>
    %c0_1 = arith.constant 0 : index
    %c0_2 = arith.constant 0 : index
    %1 = vector.load %arg2[%c0_1, %c0_2] : memref<16x128xf32, #tpu.memory_space<vmem>>, vector<16x128xf32>
    %cst = arith.constant dense<0.000000e+00> : vector<64x128xf32>
    %2 = tpu.matmul %0, %1, %cst {dimension_numbers = #tpu.dot_dimension_numbers<[1], [0], [0], [1], [0, 0, 1, 1], [], []>} : vector<64x16xf32>, vector<16x128xf32>, vector<64x128xf32> -> vector<64x128xf32>
    %c0_3 = arith.constant 0 : index
    %c0_4 = arith.constant 0 : index
    %3 = vector.load %arg4[%c0_3, %c0_4] : memref<1x128xf32, #tpu.memory_space<vmem>>, vector<1x128xf32>
    %4 = vector.broadcast %3 : vector<1x128xf32> to vector<64x128xf32>
    %5 = arith.addf %2, %4 : vector<64x128xf32>
    %c0_5 = arith.constant 0 : index
    %c0_6 = arith.constant 0 : index
    %6 = vector.load %arg10[%c0_5, %c0_6] : memref<64x128xf32, #tpu.memory_space<vmem>>, vector<64x128xf32>
    tpu.vector_store %arg10[%c0_5, %c0_6], %5 {strides = array<i32>} : memref<64x128xf32, #tpu.memory_space<vmem>>, vector<64x128xf32>,
    %c0_7 = arith.constant 0 : index
    %c0_8 = arith.constant 0 : index
    %7 = vector.load %arg3[%c0_7, %c0_8] : memref<32x128xf32, #tpu.memory_space<vmem>>, vector<32x128xf32>
    %c0_9 = arith.constant 0 : index
    %c0_10 = arith.constant 0 : index
    %8 = vector.load %arg5[%c0_9, %c0_10] : memref<64x128xf32, #tpu.memory_space<vmem>>, vector<64x128xf32>
    %c0_11 = arith.constant 0 : index
    %c0_12 = arith.constant 0 : index
    %9 = vector.load %arg6[%c0_11, %c0_12] : memref<1x128xf32, #tpu.memory_space<vmem>>, vector<1x128xf32>
    %cst_13 = arith.constant 0.000000e+00 : f32
    %10 = vector.broadcast %cst_13 : f32 to vector<8x32xf32>
    %c0_i32 = arith.constant 0 : i32
    %c8_i32 = arith.constant 8 : i32
    %11 = arith.muli %c0_i32, %c8_i32 : i32
    %12 = tpu.assume_multiple %11, 8 : i32
    %13 = arith.index_cast %12 : i32 to index
    %c0_14 = arith.constant 0 : index
    %14 = vector.load %arg10[%13, %c0_14] : memref<64x128xf32, #tpu.memory_space<vmem>>, vector<8x128xf32>
    %cst_15 = arith.constant dense<0.000000e+00> : vector<8x128xf32>
    %15 = tpu.matmul %10, %7, %cst_15 {dimension_numbers = #tpu.dot_dimension_numbers<[1], [0], [0], [1], [0, 0, 1, 1], [], []>} : vector<8x32xf32>, vector<32x128xf32>, vector<8x128xf32> -> vector<8x128xf32>
    %16 = arith.addf %14, %15 : vector<8x128xf32>
    %17 = vector.extract_strided_slice %16 {offsets = [0, 0], sizes = [8, 32], strides = [1, 1]} : vector<8x128xf32> to vector<8x32xf32>
    %18 = arith.negf %17 : vector<8x32xf32>
    %19 = math.exp %18 : vector<8x32xf32>
    %cst_16 = arith.constant 1.000000e+00 : f32
    %20 = vector.broadcast %cst_16 : f32 to vector<8x32xf32>
    %21 = arith.addf %20, %19 : vector<8x32xf32>
    %22 = arith.divf %20, %21 : vector<8x32xf32>
    %23 = vector.extract_strided_slice %16 {offsets = [0, 32], sizes = [8, 32], strides = [1, 1]} : vector<8x128xf32> to vector<8x32xf32>
    %24 = arith.negf %23 : vector<8x32xf32>
    %25 = math.exp %24 : vector<8x32xf32>
    %cst_17 = arith.constant 1.000000e+00 : f32
    %26 = vector.broadcast %cst_17 : f32 to vector<8x32xf32>
    %27 = arith.addf %26, %25 : vector<8x32xf32>
    %28 = arith.divf %26, %27 : vector<8x32xf32>
    %29 = vector.extract_strided_slice %16 {offsets = [0, 64], sizes = [8, 32], strides = [1, 1]} : vector<8x128xf32> to vector<8x32xf32>
    %30 = math.tanh %29 : vector<8x32xf32>
    %31 = vector.extract_strided_slice %16 {offsets = [0, 96], sizes = [8, 32], strides = [1, 1]} : vector<8x128xf32> to vector<8x32xf32>
    %32 = arith.negf %31 : vector<8x32xf32>
    %33 = math.exp %32 : vector<8x32xf32>
    %cst_18 = arith.constant 1.000000e+00 : f32
    %34 = vector.broadcast %cst_18 : f32 to vector<8x32xf32>
    %35 = arith.addf %34, %33 : vector<8x32xf32>
    %36 = arith.divf %34, %35 : vector<8x32xf32>
    %37 = arith.mulf %28, %10 : vector<8x32xf32>
    %38 = arith.mulf %22, %30 : vector<8x32xf32>
    %39 = arith.addf %37, %38 : vector<8x32xf32>
    %40 = math.tanh %39 : vector<8x32xf32>
    %41 = arith.mulf %36, %40 : vector<8x32xf32>
    %42 = tpu.concatenate %41, %10 in 1 : vector<8x32xf32>, vector<8x32xf32> -> vector<8x64xf32>
    %cst_19 = arith.constant dense<0.000000e+00> : vector<8x128xf32>
    %43 = tpu.matmul %42, %8, %cst_19 {dimension_numbers = #tpu.dot_dimension_numbers<[1], [0], [0], [1], [0, 0, 1, 1], [], []>} : vector<8x64xf32>, vector<64x128xf32>, vector<8x128xf32> -> vector<8x128xf32>
    %44 = vector.broadcast %9 : vector<1x128xf32> to vector<8x128xf32>
    %45 = arith.addf %43, %44 : vector<8x128xf32>
    %46 = vector.extract_strided_slice %45 {offsets = [0, 0], sizes = [8, 32], strides = [1, 1]} : vector<8x128xf32> to vector<8x32xf32>
    %47 = arith.negf %46 : vector<8x32xf32>
    %48 = math.exp %47 : vector<8x32xf32>
    %cst_20 = arith.constant 1.000000e+00 : f32
    %49 = vector.broadcast %cst_20 : f32 to vector<8x32xf32>
    %50 = arith.addf %49, %48 : vector<8x32xf32>
    %51 = arith.divf %49, %50 : vector<8x32xf32>
    %52 = vector.extract_strided_slice %45 {offsets = [0, 32], sizes = [8, 32], strides = [1, 1]} : vector<8x128xf32> to vector<8x32xf32>
    %53 = arith.negf %52 : vector<8x32xf32>
    %54 = math.exp %53 : vector<8x32xf32>
    %cst_21 = arith.constant 1.000000e+00 : f32
    %55 = vector.broadcast %cst_21 : f32 to vector<8x32xf32>
    %56 = arith.addf %55, %54 : vector<8x32xf32>
    %57 = arith.divf %55, %56 : vector<8x32xf32>
    %58 = vector.extract_strided_slice %45 {offsets = [0, 64], sizes = [8, 32], strides = [1, 1]} : vector<8x128xf32> to vector<8x32xf32>
    %59 = math.tanh %58 : vector<8x32xf32>
    %60 = vector.extract_strided_slice %45 {offsets = [0, 96], sizes = [8, 32], strides = [1, 1]} : vector<8x128xf32> to vector<8x32xf32>
    %61 = arith.negf %60 : vector<8x32xf32>
    %62 = math.exp %61 : vector<8x32xf32>
    %cst_22 = arith.constant 1.000000e+00 : f32
    %63 = vector.broadcast %cst_22 : f32 to vector<8x32xf32>
    %64 = arith.addf %63, %62 : vector<8x32xf32>
    %65 = arith.divf %63, %64 : vector<8x32xf32>
    %66 = arith.mulf %57, %10 : vector<8x32xf32>
    %67 = arith.mulf %51, %59 : vector<8x32xf32>
    %68 = arith.addf %66, %67 : vector<8x32xf32>
    %69 = math.tanh %68 : vector<8x32xf32>
    %70 = arith.mulf %65, %69 : vector<8x32xf32>
    %c1_i32 = arith.constant 1 : i32
    %c8_i32_23 = arith.constant 8 : i32
    %71 = arith.muli %c1_i32, %c8_i32_23 : i32
    %72 = tpu.assume_multiple %71, 8 : i32
    %73 = arith.index_cast %72 : i32 to index
    %c0_24 = arith.constant 0 : index
    %74 = vector.load %arg10[%73, %c0_24] : memref<64x128xf32, #tpu.memory_space<vmem>>, vector<8x128xf32>
    %cst_25 = arith.constant dense<0.000000e+00> : vector<8x128xf32>
    %75 = tpu.matmul %41, %7, %cst_25 {dimension_numbers = #tpu.dot_dimension_numbers<[1], [0], [0], [1], [0, 0, 1, 1], [], []>} : vector<8x32xf32>, vector<32x128xf32>, vector<8x128xf32> -> vector<8x128xf32>
    %76 = arith.addf %74, %75 : vector<8x128xf32>
    %77 = vector.extract_strided_slice %76 {offsets = [0, 0], sizes = [8, 32], strides = [1, 1]} : vector<8x128xf32> to vector<8x32xf32>
    %78 = arith.negf %77 : vector<8x32xf32>
    %79 = math.exp %78 : vector<8x32xf32>
    %cst_26 = arith.constant 1.000000e+00 : f32
    %80 = vector.broadcast %cst_26 : f32 to vector<8x32xf32>
    %81 = arith.addf %80, %79 : vector<8x32xf32>
    %82 = arith.divf %80, %81 : vector<8x32xf32>
    %83 = vector.extract_strided_slice %76 {offsets = [0, 32], sizes = [8, 32], strides = [1, 1]} : vector<8x128xf32> to vector<8x32xf32>
    %84 = arith.negf %83 : vector<8x32xf32>
    %85 = math.exp %84 : vector<8x32xf32>
    %cst_27 = arith.constant 1.000000e+00 : f32
    %86 = vector.broadcast %cst_27 : f32 to vector<8x32xf32>
    %87 = arith.addf %86, %85 : vector<8x32xf32>
    %88 = arith.divf %86, %87 : vector<8x32xf32>
    %89 = vector.extract_strided_slice %76 {offsets = [0, 64], sizes = [8, 32], strides = [1, 1]} : vector<8x128xf32> to vector<8x32xf32>
    %90 = math.tanh %89 : vector<8x32xf32>
    %91 = vector.extract_strided_slice %76 {offsets = [0, 96], sizes = [8, 32], strides = [1, 1]} : vector<8x128xf32> to vector<8x32xf32>
    %92 = arith.negf %91 : vector<8x32xf32>
    %93 = math.exp %92 : vector<8x32xf32>
    %cst_28 = arith.constant 1.000000e+00 : f32
    %94 = vector.broadcast %cst_28 : f32 to vector<8x32xf32>
    %95 = arith.addf %94, %93 : vector<8x32xf32>
    %96 = arith.divf %94, %95 : vector<8x32xf32>
    %97 = arith.mulf %88, %39 : vector<8x32xf32>
    %98 = arith.mulf %82, %90 : vector<8x32xf32>
    %99 = arith.addf %97, %98 : vector<8x32xf32>
    %100 = math.tanh %99 : vector<8x32xf32>
    %101 = arith.mulf %96, %100 : vector<8x32xf32>
    %102 = tpu.concatenate %101, %70 in 1 : vector<8x32xf32>, vector<8x32xf32> -> vector<8x64xf32>
    %cst_29 = arith.constant dense<0.000000e+00> : vector<8x128xf32>
    %103 = tpu.matmul %102, %8, %cst_29 {dimension_numbers = #tpu.dot_dimension_numbers<[1], [0], [0], [1], [0, 0, 1, 1], [], []>} : vector<8x64xf32>, vector<64x128xf32>, vector<8x128xf32> -> vector<8x128xf32>
    %104 = vector.broadcast %9 : vector<1x128xf32> to vector<8x128xf32>
    %105 = arith.addf %103, %104 : vector<8x128xf32>
    %106 = vector.extract_strided_slice %105 {offsets = [0, 0], sizes = [8, 32], strides = [1, 1]} : vector<8x128xf32> to vector<8x32xf32>
    %107 = arith.negf %106 : vector<8x32xf32>
    %108 = math.exp %107 : vector<8x32xf32>
    %cst_30 = arith.constant 1.000000e+00 : f32
    %109 = vector.broadcast %cst_30 : f32 to vector<8x32xf32>
    %110 = arith.addf %109, %108 : vector<8x32xf32>
    %111 = arith.divf %109, %110 : vector<8x32xf32>
    %112 = vector.extract_strided_slice %105 {offsets = [0, 32], sizes = [8, 32], strides = [1, 1]} : vector<8x128xf32> to vector<8x32xf32>
    %113 = arith.negf %112 : vector<8x32xf32>
    %114 = math.exp %113 : vector<8x32xf32>
    %cst_31 = arith.constant 1.000000e+00 : f32
    %115 = vector.broadcast %cst_31 : f32 to vector<8x32xf32>
    %116 = arith.addf %115, %114 : vector<8x32xf32>
    %117 = arith.divf %115, %116 : vector<8x32xf32>
    %118 = vector.extract_strided_slice %105 {offsets = [0, 64], sizes = [8, 32], strides = [1, 1]} : vector<8x128xf32> to vector<8x32xf32>
    %119 = math.tanh %118 : vector<8x32xf32>
    %120 = vector.extract_strided_slice %105 {offsets = [0, 96], sizes = [8, 32], strides = [1, 1]} : vector<8x128xf32> to vector<8x32xf32>
    %121 = arith.negf %120 : vector<8x32xf32>
    %122 = math.exp %121 : vector<8x32xf32>
    %cst_32 = arith.constant 1.000000e+00 : f32
    %123 = vector.broadcast %cst_32 : f32 to vector<8x32xf32>
    %124 = arith.addf %123, %122 : vector<8x32xf32>
    %125 = arith.divf %123, %124 : vector<8x32xf32>
    %126 = arith.mulf %117, %68 : vector<8x32xf32>
    %127 = arith.mulf %111, %119 : vector<8x32xf32>
    %128 = arith.addf %126, %127 : vector<8x32xf32>
    %129 = math.tanh %128 : vector<8x32xf32>
    %130 = arith.mulf %125, %129 : vector<8x32xf32>
    %c2_i32 = arith.constant 2 : i32
    %c8_i32_33 = arith.constant 8 : i32
    %131 = arith.muli %c2_i32, %c8_i32_33 : i32
    %132 = tpu.assume_multiple %131, 8 : i32
    %133 = arith.index_cast %132 : i32 to index
    %c0_34 = arith.constant 0 : index
    %134 = vector.load %arg10[%133, %c0_34] : memref<64x128xf32, #tpu.memory_space<vmem>>, vector<8x128xf32>
    %cst_35 = arith.constant dense<0.000000e+00> : vector<8x128xf32>
    %135 = tpu.matmul %101, %7, %cst_35 {dimension_numbers = #tpu.dot_dimension_numbers<[1], [0], [0], [1], [0, 0, 1, 1], [], []>} : vector<8x32xf32>, vector<32x128xf32>, vector<8x128xf32> -> vector<8x128xf32>
    %136 = arith.addf %134, %135 : vector<8x128xf32>
    %137 = vector.extract_strided_slice %136 {offsets = [0, 0], sizes = [8, 32], strides = [1, 1]} : vector<8x128xf32> to vector<8x32xf32>
    %138 = arith.negf %137 : vector<8x32xf32>
    %139 = math.exp %138 : vector<8x32xf32>
    %cst_36 = arith.constant 1.000000e+00 : f32
    %140 = vector.broadcast %cst_36 : f32 to vector<8x32xf32>
    %141 = arith.addf %140, %139 : vector<8x32xf32>
    %142 = arith.divf %140, %141 : vector<8x32xf32>
    %143 = vector.extract_strided_slice %136 {offsets = [0, 32], sizes = [8, 32], strides = [1, 1]} : vector<8x128xf32> to vector<8x32xf32>
    %144 = arith.negf %143 : vector<8x32xf32>
    %145 = math.exp %144 : vector<8x32xf32>
    %cst_37 = arith.constant 1.000000e+00 : f32
    %146 = vector.broadcast %cst_37 : f32 to vector<8x32xf32>
    %147 = arith.addf %146, %145 : vector<8x32xf32>
    %148 = arith.divf %146, %147 : vector<8x32xf32>
    %149 = vector.extract_strided_slice %136 {offsets = [0, 64], sizes = [8, 32], strides = [1, 1]} : vector<8x128xf32> to vector<8x32xf32>
    %150 = math.tanh %149 : vector<8x32xf32>
    %151 = vector.extract_strided_slice %136 {offsets = [0, 96], sizes = [8, 32], strides = [1, 1]} : vector<8x128xf32> to vector<8x32xf32>
    %152 = arith.negf %151 : vector<8x32xf32>
    %153 = math.exp %152 : vector<8x32xf32>
    %cst_38 = arith.constant 1.000000e+00 : f32
    %154 = vector.broadcast %cst_38 : f32 to vector<8x32xf32>
    %155 = arith.addf %154, %153 : vector<8x32xf32>
    %156 = arith.divf %154, %155 : vector<8x32xf32>
    %157 = arith.mulf %148, %99 : vector<8x32xf32>
    %158 = arith.mulf %142, %150 : vector<8x32xf32>
    %159 = arith.addf %157, %158 : vector<8x32xf32>
    %160 = math.tanh %159 : vector<8x32xf32>
    %161 = arith.mulf %156, %160 : vector<8x32xf32>
    %162 = tpu.concatenate %161, %130 in 1 : vector<8x32xf32>, vector<8x32xf32> -> vector<8x64xf32>
    %cst_39 = arith.constant dense<0.000000e+00> : vector<8x128xf32>
    %163 = tpu.matmul %162, %8, %cst_39 {dimension_numbers = #tpu.dot_dimension_numbers<[1], [0], [0], [1], [0, 0, 1, 1], [], []>} : vector<8x64xf32>, vector<64x128xf32>, vector<8x128xf32> -> vector<8x128xf32>
    %164 = vector.broadcast %9 : vector<1x128xf32> to vector<8x128xf32>
    %165 = arith.addf %163, %164 : vector<8x128xf32>
    %166 = vector.extract_strided_slice %165 {offsets = [0, 0], sizes = [8, 32], strides = [1, 1]} : vector<8x128xf32> to vector<8x32xf32>
    %167 = arith.negf %166 : vector<8x32xf32>
    %168 = math.exp %167 : vector<8x32xf32>
    %cst_40 = arith.constant 1.000000e+00 : f32
    %169 = vector.broadcast %cst_40 : f32 to vector<8x32xf32>
    %170 = arith.addf %169, %168 : vector<8x32xf32>
    %171 = arith.divf %169, %170 : vector<8x32xf32>
    %172 = vector.extract_strided_slice %165 {offsets = [0, 32], sizes = [8, 32], strides = [1, 1]} : vector<8x128xf32> to vector<8x32xf32>
    %173 = arith.negf %172 : vector<8x32xf32>
    %174 = math.exp %173 : vector<8x32xf32>
    %cst_41 = arith.constant 1.000000e+00 : f32
    %175 = vector.broadcast %cst_41 : f32 to vector<8x32xf32>
    %176 = arith.addf %175, %174 : vector<8x32xf32>
    %177 = arith.divf %175, %176 : vector<8x32xf32>
    %178 = vector.extract_strided_slice %165 {offsets = [0, 64], sizes = [8, 32], strides = [1, 1]} : vector<8x128xf32> to vector<8x32xf32>
    %179 = math.tanh %178 : vector<8x32xf32>
    %180 = vector.extract_strided_slice %165 {offsets = [0, 96], sizes = [8, 32], strides = [1, 1]} : vector<8x128xf32> to vector<8x32xf32>
    %181 = arith.negf %180 : vector<8x32xf32>
    %182 = math.exp %181 : vector<8x32xf32>
    %cst_42 = arith.constant 1.000000e+00 : f32
    %183 = vector.broadcast %cst_42 : f32 to vector<8x32xf32>
    %184 = arith.addf %183, %182 : vector<8x32xf32>
    %185 = arith.divf %183, %184 : vector<8x32xf32>
    %186 = arith.mulf %177, %128 : vector<8x32xf32>
    %187 = arith.mulf %171, %179 : vector<8x32xf32>
    %188 = arith.addf %186, %187 : vector<8x32xf32>
    %189 = math.tanh %188 : vector<8x32xf32>
    %190 = arith.mulf %185, %189 : vector<8x32xf32>
    %c3_i32 = arith.constant 3 : i32
    %c8_i32_43 = arith.constant 8 : i32
    %191 = arith.muli %c3_i32, %c8_i32_43 : i32
    %192 = tpu.assume_multiple %191, 8 : i32
    %193 = arith.index_cast %192 : i32 to index
    %c0_44 = arith.constant 0 : index
    %194 = vector.load %arg10[%193, %c0_44] : memref<64x128xf32, #tpu.memory_space<vmem>>, vector<8x128xf32>
    %cst_45 = arith.constant dense<0.000000e+00> : vector<8x128xf32>
    %195 = tpu.matmul %161, %7, %cst_45 {dimension_numbers = #tpu.dot_dimension_numbers<[1], [0], [0], [1], [0, 0, 1, 1], [], []>} : vector<8x32xf32>, vector<32x128xf32>, vector<8x128xf32> -> vector<8x128xf32>
    %196 = arith.addf %194, %195 : vector<8x128xf32>
    %197 = vector.extract_strided_slice %196 {offsets = [0, 0], sizes = [8, 32], strides = [1, 1]} : vector<8x128xf32> to vector<8x32xf32>
    %198 = arith.negf %197 : vector<8x32xf32>
    %199 = math.exp %198 : vector<8x32xf32>
    %cst_46 = arith.constant 1.000000e+00 : f32
    %200 = vector.broadcast %cst_46 : f32 to vector<8x32xf32>
    %201 = arith.addf %200, %199 : vector<8x32xf32>
    %202 = arith.divf %200, %201 : vector<8x32xf32>
    %203 = vector.extract_strided_slice %196 {offsets = [0, 32], sizes = [8, 32], strides = [1, 1]} : vector<8x128xf32> to vector<8x32xf32>
    %204 = arith.negf %203 : vector<8x32xf32>
    %205 = math.exp %204 : vector<8x32xf32>
    %cst_47 = arith.constant 1.000000e+00 : f32
    %206 = vector.broadcast %cst_47 : f32 to vector<8x32xf32>
    %207 = arith.addf %206, %205 : vector<8x32xf32>
    %208 = arith.divf %206, %207 : vector<8x32xf32>
    %209 = vector.extract_strided_slice %196 {offsets = [0, 64], sizes = [8, 32], strides = [1, 1]} : vector<8x128xf32> to vector<8x32xf32>
    %210 = math.tanh %209 : vector<8x32xf32>
    %211 = vector.extract_strided_slice %196 {offsets = [0, 96], sizes = [8, 32], strides = [1, 1]} : vector<8x128xf32> to vector<8x32xf32>
    %212 = arith.negf %211 : vector<8x32xf32>
    %213 = math.exp %212 : vector<8x32xf32>
    %cst_48 = arith.constant 1.000000e+00 : f32
    %214 = vector.broadcast %cst_48 : f32 to vector<8x32xf32>
    %215 = arith.addf %214, %213 : vector<8x32xf32>
    %216 = arith.divf %214, %215 : vector<8x32xf32>
    %217 = arith.mulf %208, %159 : vector<8x32xf32>
    %218 = arith.mulf %202, %210 : vector<8x32xf32>
    %219 = arith.addf %217, %218 : vector<8x32xf32>
    %220 = math.tanh %219 : vector<8x32xf32>
    %221 = arith.mulf %216, %220 : vector<8x32xf32>
    %222 = tpu.concatenate %221, %190 in 1 : vector<8x32xf32>, vector<8x32xf32> -> vector<8x64xf32>
    %cst_49 = arith.constant dense<0.000000e+00> : vector<8x128xf32>
    %223 = tpu.matmul %222, %8, %cst_49 {dimension_numbers = #tpu.dot_dimension_numbers<[1], [0], [0], [1], [0, 0, 1, 1], [], []>} : vector<8x64xf32>, vector<64x128xf32>, vector<8x128xf32> -> vector<8x128xf32>
    %224 = vector.broadcast %9 : vector<1x128xf32> to vector<8x128xf32>
    %225 = arith.addf %223, %224 : vector<8x128xf32>
    %226 = vector.extract_strided_slice %225 {offsets = [0, 0], sizes = [8, 32], strides = [1, 1]} : vector<8x128xf32> to vector<8x32xf32>
    %227 = arith.negf %226 : vector<8x32xf32>
    %228 = math.exp %227 : vector<8x32xf32>
    %cst_50 = arith.constant 1.000000e+00 : f32
    %229 = vector.broadcast %cst_50 : f32 to vector<8x32xf32>
    %230 = arith.addf %229, %228 : vector<8x32xf32>
    %231 = arith.divf %229, %230 : vector<8x32xf32>
    %232 = vector.extract_strided_slice %225 {offsets = [0, 32], sizes = [8, 32], strides = [1, 1]} : vector<8x128xf32> to vector<8x32xf32>
    %233 = arith.negf %232 : vector<8x32xf32>
    %234 = math.exp %233 : vector<8x32xf32>
    %cst_51 = arith.constant 1.000000e+00 : f32
    %235 = vector.broadcast %cst_51 : f32 to vector<8x32xf32>
    %236 = arith.addf %235, %234 : vector<8x32xf32>
    %237 = arith.divf %235, %236 : vector<8x32xf32>
    %238 = vector.extract_strided_slice %225 {offsets = [0, 64], sizes = [8, 32], strides = [1, 1]} : vector<8x128xf32> to vector<8x32xf32>
    %239 = math.tanh %238 : vector<8x32xf32>
    %240 = vector.extract_strided_slice %225 {offsets = [0, 96], sizes = [8, 32], strides = [1, 1]} : vector<8x128xf32> to vector<8x32xf32>
    %241 = arith.negf %240 : vector<8x32xf32>
    %242 = math.exp %241 : vector<8x32xf32>
    %cst_52 = arith.constant 1.000000e+00 : f32
    %243 = vector.broadcast %cst_52 : f32 to vector<8x32xf32>
    %244 = arith.addf %243, %242 : vector<8x32xf32>
    %245 = arith.divf %243, %244 : vector<8x32xf32>
    %246 = arith.mulf %237, %188 : vector<8x32xf32>
    %247 = arith.mulf %231, %239 : vector<8x32xf32>
    %248 = arith.addf %246, %247 : vector<8x32xf32>
    %249 = math.tanh %248 : vector<8x32xf32>
    %250 = arith.mulf %245, %249 : vector<8x32xf32>
    %c4_i32 = arith.constant 4 : i32
    %c8_i32_53 = arith.constant 8 : i32
    %251 = arith.muli %c4_i32, %c8_i32_53 : i32
    %252 = tpu.assume_multiple %251, 8 : i32
    %253 = arith.index_cast %252 : i32 to index
    %c0_54 = arith.constant 0 : index
    %254 = vector.load %arg10[%253, %c0_54] : memref<64x128xf32, #tpu.memory_space<vmem>>, vector<8x128xf32>
    %cst_55 = arith.constant dense<0.000000e+00> : vector<8x128xf32>
    %255 = tpu.matmul %221, %7, %cst_55 {dimension_numbers = #tpu.dot_dimension_numbers<[1], [0], [0], [1], [0, 0, 1, 1], [], []>} : vector<8x32xf32>, vector<32x128xf32>, vector<8x128xf32> -> vector<8x128xf32>
    %256 = arith.addf %254, %255 : vector<8x128xf32>
    %257 = vector.extract_strided_slice %256 {offsets = [0, 0], sizes = [8, 32], strides = [1, 1]} : vector<8x128xf32> to vector<8x32xf32>
    %258 = arith.negf %257 : vector<8x32xf32>
    %259 = math.exp %258 : vector<8x32xf32>
    %cst_56 = arith.constant 1.000000e+00 : f32
    %260 = vector.broadcast %cst_56 : f32 to vector<8x32xf32>
    %261 = arith.addf %260, %259 : vector<8x32xf32>
    %262 = arith.divf %260, %261 : vector<8x32xf32>
    %263 = vector.extract_strided_slice %256 {offsets = [0, 32], sizes = [8, 32], strides = [1, 1]} : vector<8x128xf32> to vector<8x32xf32>
    %264 = arith.negf %263 : vector<8x32xf32>
    %265 = math.exp %264 : vector<8x32xf32>
    %cst_57 = arith.constant 1.000000e+00 : f32
    %266 = vector.broadcast %cst_57 : f32 to vector<8x32xf32>
    %267 = arith.addf %266, %265 : vector<8x32xf32>
    %268 = arith.divf %266, %267 : vector<8x32xf32>
    %269 = vector.extract_strided_slice %256 {offsets = [0, 64], sizes = [8, 32], strides = [1, 1]} : vector<8x128xf32> to vector<8x32xf32>
    %270 = math.tanh %269 : vector<8x32xf32>
    %271 = vector.extract_strided_slice %256 {offsets = [0, 96], sizes = [8, 32], strides = [1, 1]} : vector<8x128xf32> to vector<8x32xf32>
    %272 = arith.negf %271 : vector<8x32xf32>
    %273 = math.exp %272 : vector<8x32xf32>
    %cst_58 = arith.constant 1.000000e+00 : f32
    %274 = vector.broadcast %cst_58 : f32 to vector<8x32xf32>
    %275 = arith.addf %274, %273 : vector<8x32xf32>
    %276 = arith.divf %274, %275 : vector<8x32xf32>
    %277 = arith.mulf %268, %219 : vector<8x32xf32>
    %278 = arith.mulf %262, %270 : vector<8x32xf32>
    %279 = arith.addf %277, %278 : vector<8x32xf32>
    %280 = math.tanh %279 : vector<8x32xf32>
    %281 = arith.mulf %276, %280 : vector<8x32xf32>
    %282 = tpu.concatenate %281, %250 in 1 : vector<8x32xf32>, vector<8x32xf32> -> vector<8x64xf32>
    %cst_59 = arith.constant dense<0.000000e+00> : vector<8x128xf32>
    %283 = tpu.matmul %282, %8, %cst_59 {dimension_numbers = #tpu.dot_dimension_numbers<[1], [0], [0], [1], [0, 0, 1, 1], [], []>} : vector<8x64xf32>, vector<64x128xf32>, vector<8x128xf32> -> vector<8x128xf32>
    %284 = vector.broadcast %9 : vector<1x128xf32> to vector<8x128xf32>
    %285 = arith.addf %283, %284 : vector<8x128xf32>
    %286 = vector.extract_strided_slice %285 {offsets = [0, 0], sizes = [8, 32], strides = [1, 1]} : vector<8x128xf32> to vector<8x32xf32>
    %287 = arith.negf %286 : vector<8x32xf32>
    %288 = math.exp %287 : vector<8x32xf32>
    %cst_60 = arith.constant 1.000000e+00 : f32
    %289 = vector.broadcast %cst_60 : f32 to vector<8x32xf32>
    %290 = arith.addf %289, %288 : vector<8x32xf32>
    %291 = arith.divf %289, %290 : vector<8x32xf32>
    %292 = vector.extract_strided_slice %285 {offsets = [0, 32], sizes = [8, 32], strides = [1, 1]} : vector<8x128xf32> to vector<8x32xf32>
    %293 = arith.negf %292 : vector<8x32xf32>
    %294 = math.exp %293 : vector<8x32xf32>
    %cst_61 = arith.constant 1.000000e+00 : f32
    %295 = vector.broadcast %cst_61 : f32 to vector<8x32xf32>
    %296 = arith.addf %295, %294 : vector<8x32xf32>
    %297 = arith.divf %295, %296 : vector<8x32xf32>
    %298 = vector.extract_strided_slice %285 {offsets = [0, 64], sizes = [8, 32], strides = [1, 1]} : vector<8x128xf32> to vector<8x32xf32>
    %299 = math.tanh %298 : vector<8x32xf32>
    %300 = vector.extract_strided_slice %285 {offsets = [0, 96], sizes = [8, 32], strides = [1, 1]} : vector<8x128xf32> to vector<8x32xf32>
    %301 = arith.negf %300 : vector<8x32xf32>
    %302 = math.exp %301 : vector<8x32xf32>
    %cst_62 = arith.constant 1.000000e+00 : f32
    %303 = vector.broadcast %cst_62 : f32 to vector<8x32xf32>
    %304 = arith.addf %303, %302 : vector<8x32xf32>
    %305 = arith.divf %303, %304 : vector<8x32xf32>
    %306 = arith.mulf %297, %248 : vector<8x32xf32>
    %307 = arith.mulf %291, %299 : vector<8x32xf32>
    %308 = arith.addf %306, %307 : vector<8x32xf32>
    %309 = math.tanh %308 : vector<8x32xf32>
    %310 = arith.mulf %305, %309 : vector<8x32xf32>
    %c5_i32 = arith.constant 5 : i32
    %c8_i32_63 = arith.constant 8 : i32
    %311 = arith.muli %c5_i32, %c8_i32_63 : i32
    %312 = tpu.assume_multiple %311, 8 : i32
    %313 = arith.index_cast %312 : i32 to index
    %c0_64 = arith.constant 0 : index
    %314 = vector.load %arg10[%313, %c0_64] : memref<64x128xf32, #tpu.memory_space<vmem>>, vector<8x128xf32>
    %cst_65 = arith.constant dense<0.000000e+00> : vector<8x128xf32>
    %315 = tpu.matmul %281, %7, %cst_65 {dimension_numbers = #tpu.dot_dimension_numbers<[1], [0], [0], [1], [0, 0, 1, 1], [], []>} : vector<8x32xf32>, vector<32x128xf32>, vector<8x128xf32> -> vector<8x128xf32>
    %316 = arith.addf %314, %315 : vector<8x128xf32>
    %317 = vector.extract_strided_slice %316 {offsets = [0, 0], sizes = [8, 32], strides = [1, 1]} : vector<8x128xf32> to vector<8x32xf32>
    %318 = arith.negf %317 : vector<8x32xf32>
    %319 = math.exp %318 : vector<8x32xf32>
    %cst_66 = arith.constant 1.000000e+00 : f32
    %320 = vector.broadcast %cst_66 : f32 to vector<8x32xf32>
    %321 = arith.addf %320, %319 : vector<8x32xf32>
    %322 = arith.divf %320, %321 : vector<8x32xf32>
    %323 = vector.extract_strided_slice %316 {offsets = [0, 32], sizes = [8, 32], strides = [1, 1]} : vector<8x128xf32> to vector<8x32xf32>
    %324 = arith.negf %323 : vector<8x32xf32>
    %325 = math.exp %324 : vector<8x32xf32>
    %cst_67 = arith.constant 1.000000e+00 : f32
    %326 = vector.broadcast %cst_67 : f32 to vector<8x32xf32>
    %327 = arith.addf %326, %325 : vector<8x32xf32>
    %328 = arith.divf %326, %327 : vector<8x32xf32>
    %329 = vector.extract_strided_slice %316 {offsets = [0, 64], sizes = [8, 32], strides = [1, 1]} : vector<8x128xf32> to vector<8x32xf32>
    %330 = math.tanh %329 : vector<8x32xf32>
    %331 = vector.extract_strided_slice %316 {offsets = [0, 96], sizes = [8, 32], strides = [1, 1]} : vector<8x128xf32> to vector<8x32xf32>
    %332 = arith.negf %331 : vector<8x32xf32>
    %333 = math.exp %332 : vector<8x32xf32>
    %cst_68 = arith.constant 1.000000e+00 : f32
    %334 = vector.broadcast %cst_68 : f32 to vector<8x32xf32>
    %335 = arith.addf %334, %333 : vector<8x32xf32>
    %336 = arith.divf %334, %335 : vector<8x32xf32>
    %337 = arith.mulf %328, %279 : vector<8x32xf32>
    %338 = arith.mulf %322, %330 : vector<8x32xf32>
    %339 = arith.addf %337, %338 : vector<8x32xf32>
    %340 = math.tanh %339 : vector<8x32xf32>
    %341 = arith.mulf %336, %340 : vector<8x32xf32>
    %342 = tpu.concatenate %341, %310 in 1 : vector<8x32xf32>, vector<8x32xf32> -> vector<8x64xf32>
    %cst_69 = arith.constant dense<0.000000e+00> : vector<8x128xf32>
    %343 = tpu.matmul %342, %8, %cst_69 {dimension_numbers = #tpu.dot_dimension_numbers<[1], [0], [0], [1], [0, 0, 1, 1], [], []>} : vector<8x64xf32>, vector<64x128xf32>, vector<8x128xf32> -> vector<8x128xf32>
    %344 = vector.broadcast %9 : vector<1x128xf32> to vector<8x128xf32>
    %345 = arith.addf %343, %344 : vector<8x128xf32>
    %346 = vector.extract_strided_slice %345 {offsets = [0, 0], sizes = [8, 32], strides = [1, 1]} : vector<8x128xf32> to vector<8x32xf32>
    %347 = arith.negf %346 : vector<8x32xf32>
    %348 = math.exp %347 : vector<8x32xf32>
    %cst_70 = arith.constant 1.000000e+00 : f32
    %349 = vector.broadcast %cst_70 : f32 to vector<8x32xf32>
    %350 = arith.addf %349, %348 : vector<8x32xf32>
    %351 = arith.divf %349, %350 : vector<8x32xf32>
    %352 = vector.extract_strided_slice %345 {offsets = [0, 32], sizes = [8, 32], strides = [1, 1]} : vector<8x128xf32> to vector<8x32xf32>
    %353 = arith.negf %352 : vector<8x32xf32>
    %354 = math.exp %353 : vector<8x32xf32>
    %cst_71 = arith.constant 1.000000e+00 : f32
    %355 = vector.broadcast %cst_71 : f32 to vector<8x32xf32>
    %356 = arith.addf %355, %354 : vector<8x32xf32>
    %357 = arith.divf %355, %356 : vector<8x32xf32>
    %358 = vector.extract_strided_slice %345 {offsets = [0, 64], sizes = [8, 32], strides = [1, 1]} : vector<8x128xf32> to vector<8x32xf32>
    %359 = math.tanh %358 : vector<8x32xf32>
    %360 = vector.extract_strided_slice %345 {offsets = [0, 96], sizes = [8, 32], strides = [1, 1]} : vector<8x128xf32> to vector<8x32xf32>
    %361 = arith.negf %360 : vector<8x32xf32>
    %362 = math.exp %361 : vector<8x32xf32>
    %cst_72 = arith.constant 1.000000e+00 : f32
    %363 = vector.broadcast %cst_72 : f32 to vector<8x32xf32>
    %364 = arith.addf %363, %362 : vector<8x32xf32>
    %365 = arith.divf %363, %364 : vector<8x32xf32>
    %366 = arith.mulf %357, %308 : vector<8x32xf32>
    %367 = arith.mulf %351, %359 : vector<8x32xf32>
    %368 = arith.addf %366, %367 : vector<8x32xf32>
    %369 = math.tanh %368 : vector<8x32xf32>
    %370 = arith.mulf %365, %369 : vector<8x32xf32>
    %c6_i32 = arith.constant 6 : i32
    %c8_i32_73 = arith.constant 8 : i32
    %371 = arith.muli %c6_i32, %c8_i32_73 : i32
    %372 = tpu.assume_multiple %371, 8 : i32
    %373 = arith.index_cast %372 : i32 to index
    %c0_74 = arith.constant 0 : index
    %374 = vector.load %arg10[%373, %c0_74] : memref<64x128xf32, #tpu.memory_space<vmem>>, vector<8x128xf32>
    %cst_75 = arith.constant dense<0.000000e+00> : vector<8x128xf32>
    %375 = tpu.matmul %341, %7, %cst_75 {dimension_numbers = #tpu.dot_dimension_numbers<[1], [0], [0], [1], [0, 0, 1, 1], [], []>} : vector<8x32xf32>, vector<32x128xf32>, vector<8x128xf32> -> vector<8x128xf32>
    %376 = arith.addf %374, %375 : vector<8x128xf32>
    %377 = vector.extract_strided_slice %376 {offsets = [0, 0], sizes = [8, 32], strides = [1, 1]} : vector<8x128xf32> to vector<8x32xf32>
    %378 = arith.negf %377 : vector<8x32xf32>
    %379 = math.exp %378 : vector<8x32xf32>
    %cst_76 = arith.constant 1.000000e+00 : f32
    %380 = vector.broadcast %cst_76 : f32 to vector<8x32xf32>
    %381 = arith.addf %380, %379 : vector<8x32xf32>
    %382 = arith.divf %380, %381 : vector<8x32xf32>
    %383 = vector.extract_strided_slice %376 {offsets = [0, 32], sizes = [8, 32], strides = [1, 1]} : vector<8x128xf32> to vector<8x32xf32>
    %384 = arith.negf %383 : vector<8x32xf32>
    %385 = math.exp %384 : vector<8x32xf32>
    %cst_77 = arith.constant 1.000000e+00 : f32
    %386 = vector.broadcast %cst_77 : f32 to vector<8x32xf32>
    %387 = arith.addf %386, %385 : vector<8x32xf32>
    %388 = arith.divf %386, %387 : vector<8x32xf32>
    %389 = vector.extract_strided_slice %376 {offsets = [0, 64], sizes = [8, 32], strides = [1, 1]} : vector<8x128xf32> to vector<8x32xf32>
    %390 = math.tanh %389 : vector<8x32xf32>
    %391 = vector.extract_strided_slice %376 {offsets = [0, 96], sizes = [8, 32], strides = [1, 1]} : vector<8x128xf32> to vector<8x32xf32>
    %392 = arith.negf %391 : vector<8x32xf32>
    %393 = math.exp %392 : vector<8x32xf32>
    %cst_78 = arith.constant 1.000000e+00 : f32
    %394 = vector.broadcast %cst_78 : f32 to vector<8x32xf32>
    %395 = arith.addf %394, %393 : vector<8x32xf32>
    %396 = arith.divf %394, %395 : vector<8x32xf32>
    %397 = arith.mulf %388, %339 : vector<8x32xf32>
    %398 = arith.mulf %382, %390 : vector<8x32xf32>
    %399 = arith.addf %397, %398 : vector<8x32xf32>
    %400 = math.tanh %399 : vector<8x32xf32>
    %401 = arith.mulf %396, %400 : vector<8x32xf32>
    %402 = tpu.concatenate %401, %370 in 1 : vector<8x32xf32>, vector<8x32xf32> -> vector<8x64xf32>
    %cst_79 = arith.constant dense<0.000000e+00> : vector<8x128xf32>
    %403 = tpu.matmul %402, %8, %cst_79 {dimension_numbers = #tpu.dot_dimension_numbers<[1], [0], [0], [1], [0, 0, 1, 1], [], []>} : vector<8x64xf32>, vector<64x128xf32>, vector<8x128xf32> -> vector<8x128xf32>
    %404 = vector.broadcast %9 : vector<1x128xf32> to vector<8x128xf32>
    %405 = arith.addf %403, %404 : vector<8x128xf32>
    %406 = vector.extract_strided_slice %405 {offsets = [0, 0], sizes = [8, 32], strides = [1, 1]} : vector<8x128xf32> to vector<8x32xf32>
    %407 = arith.negf %406 : vector<8x32xf32>
    %408 = math.exp %407 : vector<8x32xf32>
    %cst_80 = arith.constant 1.000000e+00 : f32
    %409 = vector.broadcast %cst_80 : f32 to vector<8x32xf32>
    %410 = arith.addf %409, %408 : vector<8x32xf32>
    %411 = arith.divf %409, %410 : vector<8x32xf32>
    %412 = vector.extract_strided_slice %405 {offsets = [0, 32], sizes = [8, 32], strides = [1, 1]} : vector<8x128xf32> to vector<8x32xf32>
    %413 = arith.negf %412 : vector<8x32xf32>
    %414 = math.exp %413 : vector<8x32xf32>
    %cst_81 = arith.constant 1.000000e+00 : f32
    %415 = vector.broadcast %cst_81 : f32 to vector<8x32xf32>
    %416 = arith.addf %415, %414 : vector<8x32xf32>
    %417 = arith.divf %415, %416 : vector<8x32xf32>
    %418 = vector.extract_strided_slice %405 {offsets = [0, 64], sizes = [8, 32], strides = [1, 1]} : vector<8x128xf32> to vector<8x32xf32>
    %419 = math.tanh %418 : vector<8x32xf32>
    %420 = vector.extract_strided_slice %405 {offsets = [0, 96], sizes = [8, 32], strides = [1, 1]} : vector<8x128xf32> to vector<8x32xf32>
    %421 = arith.negf %420 : vector<8x32xf32>
    %422 = math.exp %421 : vector<8x32xf32>
    %cst_82 = arith.constant 1.000000e+00 : f32
    %423 = vector.broadcast %cst_82 : f32 to vector<8x32xf32>
    %424 = arith.addf %423, %422 : vector<8x32xf32>
    %425 = arith.divf %423, %424 : vector<8x32xf32>
    %426 = arith.mulf %417, %368 : vector<8x32xf32>
    %427 = arith.mulf %411, %419 : vector<8x32xf32>
    %428 = arith.addf %426, %427 : vector<8x32xf32>
    %429 = math.tanh %428 : vector<8x32xf32>
    %430 = arith.mulf %425, %429 : vector<8x32xf32>
    %c7_i32 = arith.constant 7 : i32
    %c8_i32_83 = arith.constant 8 : i32
    %431 = arith.muli %c7_i32, %c8_i32_83 : i32
    %432 = tpu.assume_multiple %431, 8 : i32
    %433 = arith.index_cast %432 : i32 to index
    %c0_84 = arith.constant 0 : index
    %434 = vector.load %arg10[%433, %c0_84] : memref<64x128xf32, #tpu.memory_space<vmem>>, vector<8x128xf32>
    %cst_85 = arith.constant dense<0.000000e+00> : vector<8x128xf32>
    %435 = tpu.matmul %401, %7, %cst_85 {dimension_numbers = #tpu.dot_dimension_numbers<[1], [0], [0], [1], [0, 0, 1, 1], [], []>} : vector<8x32xf32>, vector<32x128xf32>, vector<8x128xf32> -> vector<8x128xf32>
    %436 = arith.addf %434, %435 : vector<8x128xf32>
    %437 = vector.extract_strided_slice %436 {offsets = [0, 0], sizes = [8, 32], strides = [1, 1]} : vector<8x128xf32> to vector<8x32xf32>
    %438 = arith.negf %437 : vector<8x32xf32>
    %439 = math.exp %438 : vector<8x32xf32>
    %cst_86 = arith.constant 1.000000e+00 : f32
    %440 = vector.broadcast %cst_86 : f32 to vector<8x32xf32>
    %441 = arith.addf %440, %439 : vector<8x32xf32>
    %442 = arith.divf %440, %441 : vector<8x32xf32>
    %443 = vector.extract_strided_slice %436 {offsets = [0, 32], sizes = [8, 32], strides = [1, 1]} : vector<8x128xf32> to vector<8x32xf32>
    %444 = arith.negf %443 : vector<8x32xf32>
    %445 = math.exp %444 : vector<8x32xf32>
    %cst_87 = arith.constant 1.000000e+00 : f32
    %446 = vector.broadcast %cst_87 : f32 to vector<8x32xf32>
    %447 = arith.addf %446, %445 : vector<8x32xf32>
    %448 = arith.divf %446, %447 : vector<8x32xf32>
    %449 = vector.extract_strided_slice %436 {offsets = [0, 64], sizes = [8, 32], strides = [1, 1]} : vector<8x128xf32> to vector<8x32xf32>
    %450 = math.tanh %449 : vector<8x32xf32>
    %451 = vector.extract_strided_slice %436 {offsets = [0, 96], sizes = [8, 32], strides = [1, 1]} : vector<8x128xf32> to vector<8x32xf32>
    %452 = arith.negf %451 : vector<8x32xf32>
    %453 = math.exp %452 : vector<8x32xf32>
    %cst_88 = arith.constant 1.000000e+00 : f32
    %454 = vector.broadcast %cst_88 : f32 to vector<8x32xf32>
    %455 = arith.addf %454, %453 : vector<8x32xf32>
    %456 = arith.divf %454, %455 : vector<8x32xf32>
    %457 = arith.mulf %448, %399 : vector<8x32xf32>
    %458 = arith.mulf %442, %450 : vector<8x32xf32>
    %459 = arith.addf %457, %458 : vector<8x32xf32>
    %460 = math.tanh %459 : vector<8x32xf32>
    %461 = arith.mulf %456, %460 : vector<8x32xf32>
    %462 = tpu.concatenate %461, %430 in 1 : vector<8x32xf32>, vector<8x32xf32> -> vector<8x64xf32>
    %cst_89 = arith.constant dense<0.000000e+00> : vector<8x128xf32>
    %463 = tpu.matmul %462, %8, %cst_89 {dimension_numbers = #tpu.dot_dimension_numbers<[1], [0], [0], [1], [0, 0, 1, 1], [], []>} : vector<8x64xf32>, vector<64x128xf32>, vector<8x128xf32> -> vector<8x128xf32>
    %464 = vector.broadcast %9 : vector<1x128xf32> to vector<8x128xf32>
    %465 = arith.addf %463, %464 : vector<8x128xf32>
    %466 = vector.extract_strided_slice %465 {offsets = [0, 0], sizes = [8, 32], strides = [1, 1]} : vector<8x128xf32> to vector<8x32xf32>
    %467 = arith.negf %466 : vector<8x32xf32>
    %468 = math.exp %467 : vector<8x32xf32>
    %cst_90 = arith.constant 1.000000e+00 : f32
    %469 = vector.broadcast %cst_90 : f32 to vector<8x32xf32>
    %470 = arith.addf %469, %468 : vector<8x32xf32>
    %471 = arith.divf %469, %470 : vector<8x32xf32>
    %472 = vector.extract_strided_slice %465 {offsets = [0, 32], sizes = [8, 32], strides = [1, 1]} : vector<8x128xf32> to vector<8x32xf32>
    %473 = arith.negf %472 : vector<8x32xf32>
    %474 = math.exp %473 : vector<8x32xf32>
    %cst_91 = arith.constant 1.000000e+00 : f32
    %475 = vector.broadcast %cst_91 : f32 to vector<8x32xf32>
    %476 = arith.addf %475, %474 : vector<8x32xf32>
    %477 = arith.divf %475, %476 : vector<8x32xf32>
    %478 = vector.extract_strided_slice %465 {offsets = [0, 64], sizes = [8, 32], strides = [1, 1]} : vector<8x128xf32> to vector<8x32xf32>
    %479 = math.tanh %478 : vector<8x32xf32>
    %480 = vector.extract_strided_slice %465 {offsets = [0, 96], sizes = [8, 32], strides = [1, 1]} : vector<8x128xf32> to vector<8x32xf32>
    %481 = arith.negf %480 : vector<8x32xf32>
    %482 = math.exp %481 : vector<8x32xf32>
    %cst_92 = arith.constant 1.000000e+00 : f32
    %483 = vector.broadcast %cst_92 : f32 to vector<8x32xf32>
    %484 = arith.addf %483, %482 : vector<8x32xf32>
    %485 = arith.divf %483, %484 : vector<8x32xf32>
    %486 = arith.mulf %477, %428 : vector<8x32xf32>
    %487 = arith.mulf %471, %479 : vector<8x32xf32>
    %488 = arith.addf %486, %487 : vector<8x32xf32>
    %489 = math.tanh %488 : vector<8x32xf32>
    %490 = arith.mulf %485, %489 : vector<8x32xf32>
    %c8_i32_93 = arith.constant 8 : i32
    %c0_94 = arith.constant 0 : index
    %c0_95 = arith.constant 0 : index
    %491 = vector.load %arg7[%c0_94, %c0_95] : memref<32x4xf32, #tpu.memory_space<vmem>>, vector<32x4xf32>
    %cst_96 = arith.constant dense<0.000000e+00> : vector<8x4xf32>
    %492 = tpu.matmul %490, %491, %cst_96 {dimension_numbers = #tpu.dot_dimension_numbers<[1], [0], [0], [1], [0, 0, 1, 1], [], []>} : vector<8x32xf32>, vector<32x4xf32>, vector<8x4xf32> -> vector<8x4xf32>
    %c0_97 = arith.constant 0 : index
    %c0_98 = arith.constant 0 : index
    %493 = vector.load %arg8[%c0_97, %c0_98] : memref<1x4xf32, #tpu.memory_space<vmem>>, vector<1x4xf32>
    %494 = vector.broadcast %493 : vector<1x4xf32> to vector<8x4xf32>
    %495 = arith.addf %492, %494 : vector<8x4xf32>
    %c0_99 = arith.constant 0 : index
    %c0_100 = arith.constant 0 : index
    %496 = vector.load %arg9[%c0_99, %c0_100] : memref<8x4xf32, #tpu.memory_space<vmem>>, vector<8x4xf32>
    tpu.vector_store %arg9[%c0_99, %c0_100], %495 {strides = array<i32>} : memref<8x4xf32, #tpu.memory_space<vmem>>, vector<8x4xf32>,
    return
  }
  func.func @transform_0(%arg0: i32) -> (i32, i32) {
    %c0_i32 = arith.constant 0 : i32
    %c0_i32_0 = arith.constant 0 : i32
    %c0_i32_1 = arith.constant 0 : i32
    return %c0_i32, %c0_i32_0 : i32, i32
  }
  func.func @transform_1(%arg0: i32) -> (i32, i32) {
    %c0_i32 = arith.constant 0 : i32
    %c0_i32_0 = arith.constant 0 : i32
    %c0_i32_1 = arith.constant 0 : i32
    return %c0_i32, %c0_i32_0 : i32, i32
  }
  func.func @transform_2(%arg0: i32) -> (i32, i32) {
    %c0_i32 = arith.constant 0 : i32
    %c0_i32_0 = arith.constant 0 : i32
    %c0_i32_1 = arith.constant 0 : i32
    return %c0_i32, %c0_i32_0 : i32, i32
  }
  func.func @transform_3(%arg0: i32) -> (i32, i32) {
    %c0_i32 = arith.constant 0 : i32
    %c0_i32_0 = arith.constant 0 : i32
    %c0_i32_1 = arith.constant 0 : i32
    return %c0_i32, %c0_i32_0 : i32, i32
  }
  func.func @transform_4(%arg0: i32) -> (i32, i32) {
    %c0_i32 = arith.constant 0 : i32
    %c0_i32_0 = arith.constant 0 : i32
    %c0_i32_1 = arith.constant 0 : i32
    return %c0_i32, %c0_i32_0 : i32, i32
  }
  func.func @transform_5(%arg0: i32) -> (i32, i32) {
    %c0_i32 = arith.constant 0 : i32
    %c0_i32_0 = arith.constant 0 : i32
    %c0_i32_1 = arith.constant 0 : i32
    return %c0_i32, %c0_i32_0 : i32, i32
  }
  func.func @transform_6(%arg0: i32) -> (i32, i32) {
    %c0_i32 = arith.constant 0 : i32
    %c0_i32_0 = arith.constant 0 : i32
    %c0_i32_1 = arith.constant 0 : i32
    return %c0_i32, %c0_i32_0 : i32, i32
  }
  func.func @transform_7(%arg0: i32) -> (i32, i32) {
    %c0_i32 = arith.constant 0 : i32
    %c0_i32_0 = arith.constant 0 : i32
    %c0_i32_1 = arith.constant 0 : i32
    return %c0_i32, %c0_i32_0 : i32, i32
  }
  func.func @transform_8(%arg0: i32) -> (i32, i32) {
    %c0_i32 = arith.constant 0 : i32
    %c0_i32_0 = arith.constant 0 : i32
    %c0_i32_1 = arith.constant 0 : i32
    return %c0_i32, %c0_i32_0 : i32, i32
  }
}

</mosaic_0001>

<llo_original>
// kernel: tpu_custom_call.1
$region0: #{tpu_custom_call.1}
  #allocation0 [shape = 'u32[]', space=smem, size = 0x4, offset = 0x4, fixed_abs, tag = 'smem constant byte address 0x4 - core index']
  #allocation1 [shape = 'u32[144,128]{1,0:T(1,128)}', space=vmem, size = 0x12000, scoped, tag = 'internal scratch']
  #allocation2 [shape = 'f32[64,128]{1,0:T(8,128)}', space=vmem, size = 0x8000, scoped, tag = 'scratch operand']
  %s0 = inlined_call_operand.vmem [shape: f32[64,16], index: 0, kind: input, shape index: {}]
  %s1 = inlined_call_operand.vmem [shape: f32[16,128], index: 1, kind: input, shape index: {}]
  %s2 = inlined_call_operand.vmem [shape: f32[32,128], index: 2, kind: input, shape index: {}]
  %s3 = inlined_call_operand.vmem [shape: f32[1,128], index: 3, kind: input, shape index: {}]
  %s4 = inlined_call_operand.vmem [shape: f32[64,128], index: 4, kind: input, shape index: {}]
  %s5 = inlined_call_operand.vmem [shape: f32[1,128], index: 5, kind: input, shape index: {}]
  %s6 = inlined_call_operand.vmem [shape: f32[32,4], index: 6, kind: input, shape index: {}]
  %s7 = inlined_call_operand.vmem [shape: f32[1,4], index: 7, kind: input, shape index: {}]
  %s8 = inlined_call_operand.vmem [shape: f32[8,4], index: 8, kind: output, shape index: {}]
  %s9 = sld [smem:[#allocation0]]
  $region42: #{tpu_custom_call.1} parent=0
    _
  %s11 = ssub.s32 1, %s9
  %s12 = scalar_select 0, %s11, %s9
  // Predicated region
  $region2: #{tpu_custom_call.1} parent=0 // pred_check
    _
  $region3: #{tpu_custom_call.1} parent=0 // pred_check_branch
    %14 = sbr.rel (0) target = $region5
  $region4: #{tpu_custom_call.1} parent=0 // pred_region
    _
  $region5: #{tpu_custom_call.1} parent=0 // pred_fallthru
    _
  // Predicated region
  $region6: #{tpu_custom_call.1} parent=0 // pred_check
    _
  $region7: #{tpu_custom_call.1} parent=0 // pred_check_branch
    %16 = sbr.rel (0) target = $region9
  $region8: #{tpu_custom_call.1} parent=0 // pred_region
    _
  $region9: #{tpu_custom_call.1} parent=0 // pred_fallthru
    _
  // Predicated region
  $region10: #{tpu_custom_call.1} parent=0 // pred_check
    _
  $region11: #{tpu_custom_call.1} parent=0 // pred_check_branch
    %18 = sbr.rel (0) target = $region13
  $region12: #{tpu_custom_call.1} parent=0 // pred_region
    _
  $region13: #{tpu_custom_call.1} parent=0 // pred_fallthru
    _
  // Predicated region
  $region14: #{tpu_custom_call.1} parent=0 // pred_check
    _
  $region15: #{tpu_custom_call.1} parent=0 // pred_check_branch
    %20 = sbr.rel (0) target = $region17
  $region16: #{tpu_custom_call.1} parent=0 // pred_region
    _
  $region17: #{tpu_custom_call.1} parent=0 // pred_fallthru
    _
  // Predicated region
  $region18: #{tpu_custom_call.1} parent=0 // pred_check
    _
  $region19: #{tpu_custom_call.1} parent=0 // pred_check_branch
    %22 = sbr.rel (0) target = $region21
  $region20: #{tpu_custom_call.1} parent=0 // pred_region
    _
  $region21: #{tpu_custom_call.1} parent=0 // pred_fallthru
    _
  // Predicated region
  $region22: #{tpu_custom_call.1} parent=0 // pred_check
    _
  $region23: #{tpu_custom_call.1} parent=0 // pred_check_branch
    %24 = sbr.rel (0) target = $region25
  $region24: #{tpu_custom_call.1} parent=0 // pred_region
    _
  $region25: #{tpu_custom_call.1} parent=0 // pred_fallthru
    _
  // Predicated region
  $region26: #{tpu_custom_call.1} parent=0 // pred_check
    _
  $region27: #{tpu_custom_call.1} parent=0 // pred_check_branch
    %26 = sbr.rel (0) target = $region29
  $region28: #{tpu_custom_call.1} parent=0 // pred_region
    _
  $region29: #{tpu_custom_call.1} parent=0 // pred_fallthru
    _
  // Predicated region
  $region30: #{tpu_custom_call.1} parent=0 // pred_check
    _
  $region31: #{tpu_custom_call.1} parent=0 // pred_check_branch
    %28 = sbr.rel (0) target = $region33
  $region32: #{tpu_custom_call.1} parent=0 // pred_region
    _
  $region33: #{tpu_custom_call.1} parent=0 // pred_fallthru
    _
  %v29 = vld [vmem:[%s0] sm:$0xff]
  %v30 = vld [vmem:[%s0 + $0x8] sm:$0xff]
  %v31 = vld [vmem:[%s0 + $0x10] sm:$0xff]
  %v32 = vld [vmem:[%s0 + $0x18] sm:$0xff]
  %v33 = vld [vmem:[%s0 + $0x20] sm:$0xff]
  %v34 = vld [vmem:[%s0 + $0x28] sm:$0xff]
  %v35 = vld [vmem:[%s0 + $0x30] sm:$0xff]
  %v36 = vld [vmem:[%s0 + $0x38] sm:$0xff]
  %v37 = vld [vmem:[%s1] sm:$0xff]
  %v38 = vld [vmem:[%s1 + $0x8] sm:$0xff]
  %v39 = vld [vmem:[%s3] sm:$0x1]
  %v41 = vlaneseq
  %v42 = vshrl.u32 %v41, 7
  %v43 = vsub.s32 0, %v42
  %v44 = vrot.slane %v39, %v43
  %vm46 = vcmask 130048
  %v48 = vsel %vm46, %v29, 0
  %v51 = vsel %vm46, %v30, 0
  %v54 = vsel %vm46, %v31, 0
  %v57 = vsel %vm46, %v32, 0
  %v60 = vsel %vm46, %v33, 0
  %v63 = vsel %vm46, %v34, 0
  %v66 = vsel %vm46, %v35, 0
  %v69 = vsel %vm46, %v36, 0
  %71 = vmatprep.subr.mxu0 0.0
  %72 = vmatpush1.msra.mxu0 0.0
  %73 = vmatprep.subr.mxu0 0.0
  %74 = vmatpush1.msra.mxu0 0.0
  %75 = vmatprep.subr.mxu0 0.0
  %76 = vmatpush1.msra.mxu0 0.0
  %77 = vmatprep.subr.mxu0 0.0
  %78 = vmatpush1.msra.mxu0 0.0
  %79 = vmatprep.subr.mxu0 0.0
  %80 = vmatpush1.msra.mxu0 0.0
  %81 = vmatprep.subr.mxu0 0.0
  %82 = vmatpush1.msra.mxu0 0.0
  %83 = vmatprep.subr.mxu0 0.0
  %84 = vmatpush1.msra.mxu0 0.0
  %85 = vmatprep.subr.mxu0 0.0
  %86 = vmatpush1.msra.mxu0 0.0
  %87 = vmatprep.subr.mxu0 0.0
  %88 = vmatpush1.msra.mxu0 0.0
  %89 = vmatprep.subr.mxu0 0.0
  %90 = vmatpush1.msra.mxu0 0.0
  %91 = vmatprep.subr.mxu0 0.0
  %92 = vmatpush1.msra.mxu0 0.0
  %93 = vmatprep.subr.mxu0 0.0
  %94 = vmatpush1.msra.mxu0 0.0
  %95 = vmatprep.subr.mxu0 0.0
  %96 = vmatpush1.msra.mxu0 0.0
  %97 = vmatprep.subr.mxu0 0.0
  %98 = vmatpush1.msra.mxu0 0.0
  %99 = vmatprep.subr.mxu0 0.0
  %100 = vmatpush1.msra.mxu0 %v38
  %101 = vmatprep.subr.mxu0 0.0
  %102 = vmatpush1.msra.mxu0 %v37
  %103 = vmatprep.subr.mxu0 0.0
  %104 = vmatpush2.msra.mxu0 0.0
  %105 = vmatprep.subr.mxu0 0.0
  %106 = vmatpush2.msra.mxu0 0.0
  %107 = vmatprep.subr.mxu0 0.0
  %108 = vmatpush2.msra.mxu0 0.0
  %109 = vmatprep.subr.mxu0 0.0
  %110 = vmatpush2.msra.mxu0 0.0
  %111 = vmatprep.subr.mxu0 0.0
  %112 = vmatpush2.msra.mxu0 0.0
  %113 = vmatprep.subr.mxu0 0.0
  %114 = vmatpush2.msra.mxu0 0.0
  %115 = vmatprep.subr.mxu0 0.0
  %116 = vmatpush2.msra.mxu0 0.0
  %117 = vmatprep.subr.mxu0 0.0
  %118 = vmatpush2.msra.mxu0 0.0
  %119 = vmatprep.subr.mxu0 0.0
  %120 = vmatpush2.msra.mxu0 0.0
  %121 = vmatprep.subr.mxu0 0.0
  %122 = vmatpush2.msra.mxu0 0.0
  %123 = vmatprep.subr.mxu0 0.0
  %124 = vmatpush2.msra.mxu0 0.0
  %125 = vmatprep.subr.mxu0 0.0
  %126 = vmatpush2.msra.mxu0 0.0
  %127 = vmatprep.subr.mxu0 0.0
  %128 = vmatpush2.msra.mxu0 0.0
  %129 = vmatprep.subr.mxu0 0.0
  %130 = vmatpush2.msra.mxu0 0.0
  %131 = vmatprep.subr.mxu0 0.0
  %132 = vmatpush2.msra.mxu0 0.0
  %133 = vmatprep.subr.mxu0 0.0
  %134 = vmatpush2.msra.mxu0 0.0
  %135 = vmatprep.mubr.f32.mxu0 0.0
  %136 = vmatmul.mubr.f32.gmra.mxu0 %v48
  %v137 = vpop.f32.mrf.mxu0
  %v138 = vadd.f32 %v44, %v137
  %v139 = vpop.f32.mrf.mxu0
  %140 = vmatprep.mubr.f32.mxu0 0.0
  %141 = vmatmul.mubr.f32.gmra.mxu0 %v51
  %v142 = vpop.f32.mrf.mxu0
  %v143 = vadd.f32 %v44, %v142
  %v144 = vpop.f32.mrf.mxu0
  %145 = vmatprep.mubr.f32.mxu0 0.0
  %146 = vmatmul.mubr.f32.gmra.mxu0 %v54
  %v147 = vpop.f32.mrf.mxu0
  %v148 = vadd.f32 %v44, %v147
  %v149 = vpop.f32.mrf.mxu0
  %150 = vmatprep.mubr.f32.mxu0 0.0
  %151 = vmatmul.mubr.f32.gmra.mxu0 %v57
  %v152 = vpop.f32.mrf.mxu0
  %v153 = vadd.f32 %v44, %v152
  %v154 = vpop.f32.mrf.mxu0
  %155 = vmatprep.mubr.f32.mxu0 0.0
  %156 = vmatmul.mubr.f32.gmra.mxu0 %v60
  %v157 = vpop.f32.mrf.mxu0
  %v158 = vadd.f32 %v44, %v157
  %v159 = vpop.f32.mrf.mxu0
  %160 = vmatprep.mubr.f32.mxu0 0.0
  %161 = vmatmul.mubr.f32.gmra.mxu0 %v63
  %v162 = vpop.f32.mrf.mxu0
  %v163 = vadd.f32 %v44, %v162
  %v164 = vpop.f32.mrf.mxu0
  %165 = vmatprep.mubr.f32.mxu0 0.0
  %166 = vmatmul.mubr.f32.gmra.mxu0 %v66
  %v167 = vpop.f32.mrf.mxu0
  %v168 = vadd.f32 %v44, %v167
  %v169 = vpop.f32.mrf.mxu0
  %170 = vmatprep.mubr.f32.mxu0 0.0
  %171 = vmatmul.mubr.f32.gmra.mxu0 %v69
  %v172 = vpop.f32.mrf.mxu0
  %v173 = vadd.f32 %v44, %v172
  %v174 = vpop.f32.mrf.mxu0
  %175 = vdwg.mxu0
  %176 = vst [vmem:[#allocation2] sm:$0xff] %v138
  %177 = vst [vmem:[#allocation2 + $0x8] sm:$0xff] %v143
  %178 = vst [vmem:[#allocation2 + $0x10] sm:$0xff] %v148
  %179 = vst [vmem:[#allocation2 + $0x18] sm:$0xff] %v153
  %180 = vst [vmem:[#allocation2 + $0x20] sm:$0xff] %v158
  %181 = vst [vmem:[#allocation2 + $0x28] sm:$0xff] %v163
  %182 = vst [vmem:[#allocation2 + $0x30] sm:$0xff] %v168
  %183 = vst [vmem:[#allocation2 + $0x38] sm:$0xff] %v173
  %v184 = vld [vmem:[%s2] sm:$0xff]
  %v185 = vld [vmem:[%s2 + $0x8] sm:$0xff]
  %v186 = vld [vmem:[%s2 + $0x10] sm:$0xff]
  %v187 = vld [vmem:[%s2 + $0x18] sm:$0xff]
  %v188 = vld [vmem:[%s4] sm:$0xff]
  %v189 = vld [vmem:[%s4 + $0x8] sm:$0xff]
  %v190 = vld [vmem:[%s4 + $0x10] sm:$0xff]
  %v191 = vld [vmem:[%s4 + $0x18] sm:$0xff]
  %v192 = vld [vmem:[%s4 + $0x20] sm:$0xff]
  %v193 = vld [vmem:[%s4 + $0x28] sm:$0xff]
  %v194 = vld [vmem:[%s4 + $0x30] sm:$0xff]
  %v195 = vld [vmem:[%s4 + $0x38] sm:$0xff]
  %v196 = vld [vmem:[%s5] sm:$0x1]
  %v197 = vld [vmem:[#allocation2] sm:$0xff]
  %vm198 = vcmask 261120
  %v200 = vsel %vm198, 0.0, 0
  %202 = vmatprep.subr.mxu0 0.0
  %203 = vmatpush1.msra.mxu0 0.0
  %204 = vmatprep.subr.mxu0 0.0
  %205 = vmatpush1.msra.mxu0 0.0
  %206 = vmatprep.subr.mxu0 0.0
  %207 = vmatpush1.msra.mxu0 0.0
  %208 = vmatprep.subr.mxu0 0.0
  %209 = vmatpush1.msra.mxu0 0.0
  %210 = vmatprep.subr.mxu0 0.0
  %211 = vmatpush1.msra.mxu0 0.0
  %212 = vmatprep.subr.mxu0 0.0
  %213 = vmatpush1.msra.mxu0 0.0
  %214 = vmatprep.subr.mxu0 0.0
  %215 = vmatpush1.msra.mxu0 0.0
  %216 = vmatprep.subr.mxu0 0.0
  %217 = vmatpush1.msra.mxu0 0.0
  %218 = vmatprep.subr.mxu0 0.0
  %219 = vmatpush1.msra.mxu0 0.0
  %220 = vmatprep.subr.mxu0 0.0
  %221 = vmatpush1.msra.mxu0 0.0
  %222 = vmatprep.subr.mxu0 0.0
  %223 = vmatpush1.msra.mxu0 0.0
  %224 = vmatprep.subr.mxu0 0.0
  %225 = vmatpush1.msra.mxu0 0.0
  %226 = vmatprep.subr.mxu0 0.0
  %227 = vmatpush1.msra.mxu0 %v187
  %228 = vmatprep.subr.mxu0 0.0
  %229 = vmatpush1.msra.mxu0 %v186
  %230 = vmatprep.subr.mxu0 0.0
  %231 = vmatpush1.msra.mxu0 %v185
  %232 = vmatprep.subr.mxu0 0.0
  %233 = vmatpush1.msra.mxu0 %v184
  %234 = vmatprep.subr.mxu0 0.0
  %235 = vmatpush2.msra.mxu0 0.0
  %236 = vmatprep.subr.mxu0 0.0
  %237 = vmatpush2.msra.mxu0 0.0
  %238 = vmatprep.subr.mxu0 0.0
  %239 = vmatpush2.msra.mxu0 0.0
  %240 = vmatprep.subr.mxu0 0.0
  %241 = vmatpush2.msra.mxu0 0.0
  %242 = vmatprep.subr.mxu0 0.0
  %243 = vmatpush2.msra.mxu0 0.0
  %244 = vmatprep.subr.mxu0 0.0
  %245 = vmatpush2.msra.mxu0 0.0
  %246 = vmatprep.subr.mxu0 0.0
  %247 = vmatpush2.msra.mxu0 0.0
  %248 = vmatprep.subr.mxu0 0.0
  %249 = vmatpush2.msra.mxu0 0.0
  %250 = vmatprep.subr.mxu0 0.0
  %251 = vmatpush2.msra.mxu0 0.0
  %252 = vmatprep.subr.mxu0 0.0
  %253 = vmatpush2.msra.mxu0 0.0
  %254 = vmatprep.subr.mxu0 0.0
  %255 = vmatpush2.msra.mxu0 0.0
  %256 = vmatprep.subr.mxu0 0.0
  %257 = vmatpush2.msra.mxu0 0.0
  %258 = vmatprep.subr.mxu0 0.0
  %259 = vmatpush2.msra.mxu0 0.0
  %260 = vmatprep.subr.mxu0 0.0
  %261 = vmatpush2.msra.mxu0 0.0
  %262 = vmatprep.subr.mxu0 0.0
  %263 = vmatpush2.msra.mxu0 0.0
  %264 = vmatprep.subr.mxu0 0.0
  %265 = vmatpush2.msra.mxu0 0.0
  %266 = vmatprep.mubr.f32.mxu0 0.0
  %267 = vmatmul.mubr.f32.gmra.mxu0 %v200
  %v268 = vpop.f32.mrf.mxu0
  %v269 = vadd.f32 0.0, %v268
  %v270 = vpop.f32.mrf.mxu0
  %271 = vdwg.mxu0
  %v272 = vadd.f32 %v197, %v269
  %v273 = vxor.u32 %v272, 2147483648
  %v274 = vmul.f32 %v273, 1.442695
  %v275 = vpow.pop %v274
  %v276 = vadd.f32 %v275, 1.0
  %v277 = vrcp.pop %v276
  %v278 = vmul.f32 1.0, %v277
  %v279 = vtanh.pop %v272
  %v280 = vmul.f32 %v278, 0.0
  %282 = vrot.lane.b32.xlu0 %v279, 64
  %v283 = vpop.permute.xlu0 %282
  %v285 = vmul.f32 %v278, %v283
  %287 = vrot.lane.b32.xlu0 %v285, 32
  %v288 = vpop.permute.xlu0 %287
  %v290 = vadd.f32 %v280, %v288
  %v291 = vtanh.pop %v290
  %293 = vrot.lane.b32.xlu0 %v291, 64
  %v294 = vpop.permute.xlu0 %293
  %v296 = vmul.f32 %v278, %v294
  %298 = vrot.lane.b32.xlu0 %v296, 32
  %v299 = vpop.permute.xlu0 %298
  %v301 = vsel %vm198, %v299, 0.0
  %v303 = vlaneseq
  %v304 = vshrl.u32 %v303, 7
  %v305 = vsub.s32 0, %v304
  %v306 = vrot.slane %v196, %v305
  %vm308 = vcmask 523264
  %v310 = vsel %vm308, %v301, 0
  %312 = vmatprep.subr.mxu0 0.0
  %313 = vmatpush1.msra.mxu0 0.0
  %314 = vmatprep.subr.mxu0 0.0
  %315 = vmatpush1.msra.mxu0 0.0
  %316 = vmatprep.subr.mxu0 0.0
  %317 = vmatpush1.msra.mxu0 0.0
  %318 = vmatprep.subr.mxu0 0.0
  %319 = vmatpush1.msra.mxu0 0.0
  %320 = vmatprep.subr.mxu0 0.0
  %321 = vmatpush1.msra.mxu0 0.0
  %322 = vmatprep.subr.mxu0 0.0
  %323 = vmatpush1.msra.mxu0 0.0
  %324 = vmatprep.subr.mxu0 0.0
  %325 = vmatpush1.msra.mxu0 0.0
  %326 = vmatprep.subr.mxu0 0.0
  %327 = vmatpush1.msra.mxu0 0.0
  %328 = vmatprep.subr.mxu0 0.0
  %329 = vmatpush1.msra.mxu0 %v195
  %330 = vmatprep.subr.mxu0 0.0
  %331 = vmatpush1.msra.mxu0 %v194
  %332 = vmatprep.subr.mxu0 0.0
  %333 = vmatpush1.msra.mxu0 %v193
  %334 = vmatprep.subr.mxu0 0.0
  %335 = vmatpush1.msra.mxu0 %v192
  %336 = vmatprep.subr.mxu0 0.0
  %337 = vmatpush1.msra.mxu0 %v191
  %338 = vmatprep.subr.mxu0 0.0
  %339 = vmatpush1.msra.mxu0 %v190
  %340 = vmatprep.subr.mxu0 0.0
  %341 = vmatpush1.msra.mxu0 %v189
  %342 = vmatprep.subr.mxu0 0.0
  %343 = vmatpush1.msra.mxu0 %v188
  %344 = vmatprep.subr.mxu0 0.0
  %345 = vmatpush2.msra.mxu0 0.0
  %346 = vmatprep.subr.mxu0 0.0
  %347 = vmatpush2.msra.mxu0 0.0
  %348 = vmatprep.subr.mxu0 0.0
  %349 = vmatpush2.msra.mxu0 0.0
  %350 = vmatprep.subr.mxu0 0.0
  %351 = vmatpush2.msra.mxu0 0.0
  %352 = vmatprep.subr.mxu0 0.0
  %353 = vmatpush2.msra.mxu0 0.0
  %354 = vmatprep.subr.mxu0 0.0
  %355 = vmatpush2.msra.mxu0 0.0
  %356 = vmatprep.subr.mxu0 0.0
  %357 = vmatpush2.msra.mxu0 0.0
  %358 = vmatprep.subr.mxu0 0.0
  %359 = vmatpush2.msra.mxu0 0.0
  %360 = vmatprep.subr.mxu0 0.0
  %361 = vmatpush2.msra.mxu0 0.0
  %362 = vmatprep.subr.mxu0 0.0
  %363 = vmatpush2.msra.mxu0 0.0
  %364 = vmatprep.subr.mxu0 0.0
  %365 = vmatpush2.msra.mxu0 0.0
  %366 = vmatprep.subr.mxu0 0.0
  %367 = vmatpush2.msra.mxu0 0.0
  %368 = vmatprep.subr.mxu0 0.0
  %369 = vmatpush2.msra.mxu0 0.0
  %370 = vmatprep.subr.mxu0 0.0
  %371 = vmatpush2.msra.mxu0 0.0
  %372 = vmatprep.subr.mxu0 0.0
  %373 = vmatpush2.msra.mxu0 0.0
  %374 = vmatprep.subr.mxu0 0.0
  %375 = vmatpush2.msra.mxu0 0.0
  %376 = vmatprep.mubr.f32.mxu0 0.0
  %377 = vmatmul.mubr.f32.gmra.mxu0 %v310
  %v378 = vpop.f32.mrf.mxu0
  %v379 = vadd.f32 %v306, %v378
  %v380 = vpop.f32.mrf.mxu0
  %381 = vdwg.mxu0
  %v382 = vxor.u32 %v379, 2147483648
  %v383 = vmul.f32 %v382, 1.442695
  %v384 = vpow.pop %v383
  %v385 = vadd.f32 %v384, 1.0
  %v386 = vrcp.pop %v385
  %v387 = vmul.f32 1.0, %v386
  %v388 = vtanh.pop %v379
  %v389 = vmul.f32 %v387, 0.0
  %391 = vrot.lane.b32.xlu0 %v388, 64
  %v392 = vpop.permute.xlu0 %391
  %v394 = vmul.f32 %v387, %v392
  %396 = vrot.lane.b32.xlu0 %v394, 32
  %v397 = vpop.permute.xlu0 %396
  %v399 = vadd.f32 %v389, %v397
  %v400 = vtanh.pop %v399
  %402 = vrot.lane.b32.xlu0 %v400, 64
  %v403 = vpop.permute.xlu0 %402
  %v405 = vmul.f32 %v387, %v403
  %s406 = scalar_lea.vmem [#allocation2], 8
  %v407 = vld [vmem:[%s406] sm:$0xff]
  %v408 = vsel %vm198, %v299, 0
  %410 = vmatprep.subr.mxu0 0.0
  %411 = vmatpush1.msra.mxu0 0.0
  %412 = vmatprep.subr.mxu0 0.0
  %413 = vmatpush1.msra.mxu0 0.0
  %414 = vmatprep.subr.mxu0 0.0
  %415 = vmatpush1.msra.mxu0 0.0
  %416 = vmatprep.subr.mxu0 0.0
  %417 = vmatpush1.msra.mxu0 0.0
  %418 = vmatprep.subr.mxu0 0.0
  %419 = vmatpush1.msra.mxu0 0.0
  %420 = vmatprep.subr.mxu0 0.0
  %421 = vmatpush1.msra.mxu0 0.0
  %422 = vmatprep.subr.mxu0 0.0
  %423 = vmatpush1.msra.mxu0 0.0
  %424 = vmatprep.subr.mxu0 0.0
  %425 = vmatpush1.msra.mxu0 0.0
  %426 = vmatprep.subr.mxu0 0.0
  %427 = vmatpush1.msra.mxu0 0.0
  %428 = vmatprep.subr.mxu0 0.0
  %429 = vmatpush1.msra.mxu0 0.0
  %430 = vmatprep.subr.mxu0 0.0
  %431 = vmatpush1.msra.mxu0 0.0
  %432 = vmatprep.subr.mxu0 0.0
  %433 = vmatpush1.msra.mxu0 0.0
  %434 = vmatprep.subr.mxu0 0.0
  %435 = vmatpush1.msra.mxu0 %v187
  %436 = vmatprep.subr.mxu0 0.0
  %437 = vmatpush1.msra.mxu0 %v186
  %438 = vmatprep.subr.mxu0 0.0
  %439 = vmatpush1.msra.mxu0 %v185
  %440 = vmatprep.subr.mxu0 0.0
  %441 = vmatpush1.msra.mxu0 %v184
  %442 = vmatprep.subr.mxu0 0.0
  %443 = vmatpush2.msra.mxu0 0.0
  %444 = vmatprep.subr.mxu0 0.0
  %445 = vmatpush2.msra.mxu0 0.0
  %446 = vmatprep.subr.mxu0 0.0
  %447 = vmatpush2.msra.mxu0 0.0
  %448 = vmatprep.subr.mxu0 0.0
  %449 = vmatpush2.msra.mxu0 0.0
  %450 = vmatprep.subr.mxu0 0.0
  %451 = vmatpush2.msra.mxu0 0.0
  %452 = vmatprep.subr.mxu0 0.0
  %453 = vmatpush2.msra.mxu0 0.0
  %454 = vmatprep.subr.mxu0 0.0
  %455 = vmatpush2.msra.mxu0 0.0
  %456 = vmatprep.subr.mxu0 0.0
  %457 = vmatpush2.msra.mxu0 0.0
  %458 = vmatprep.subr.mxu0 0.0
  %459 = vmatpush2.msra.mxu0 0.0
  %460 = vmatprep.subr.mxu0 0.0
  %461 = vmatpush2.msra.mxu0 0.0
  %462 = vmatprep.subr.mxu0 0.0
  %463 = vmatpush2.msra.mxu0 0.0
  %464 = vmatprep.subr.mxu0 0.0
  %465 = vmatpush2.msra.mxu0 0.0
  %466 = vmatprep.subr.mxu0 0.0
  %467 = vmatpush2.msra.mxu0 0.0
  %468 = vmatprep.subr.mxu0 0.0
  %469 = vmatpush2.msra.mxu0 0.0
  %470 = vmatprep.subr.mxu0 0.0
  %471 = vmatpush2.msra.mxu0 0.0
  %472 = vmatprep.subr.mxu0 0.0
  %473 = vmatpush2.msra.mxu0 0.0
  %474 = vmatprep.mubr.f32.mxu0 0.0
  %475 = vmatmul.mubr.f32.gmra.mxu0 %v408
  %v476 = vpop.f32.mrf.mxu0
  %v477 = vadd.f32 0.0, %v476
  %v478 = vpop.f32.mrf.mxu0
  %479 = vdwg.mxu0
  %v480 = vadd.f32 %v407, %v477
  %v481 = vxor.u32 %v480, 2147483648
  %v482 = vmul.f32 %v481, 1.442695
  %v483 = vpow.pop %v482
  %v484 = vadd.f32 %v483, 1.0
  %v485 = vrcp.pop %v484
  %v486 = vmul.f32 1.0, %v485
  %v487 = vtanh.pop %v480
  %v488 = vmul.f32 %v486, %v290
  %490 = vrot.lane.b32.xlu0 %v487, 64
  %v491 = vpop.permute.xlu0 %490
  %v493 = vmul.f32 %v486, %v491
  %495 = vrot.lane.b32.xlu0 %v493, 32
  %v496 = vpop.permute.xlu0 %495
  %v498 = vadd.f32 %v488, %v496
  %v499 = vtanh.pop %v498
  %501 = vrot.lane.b32.xlu0 %v499, 64
  %v502 = vpop.permute.xlu0 %501
  %v504 = vmul.f32 %v486, %v502
  %506 = vrot.lane.b32.xlu0 %v504, 32
  %v507 = vpop.permute.xlu0 %506
  %510 = vrot.lane.b32.xlu0 %v405, 64
  %v511 = vpop.permute.xlu0 %510
  %v513 = vsel %vm198, %v507, %v511
  %v515 = vsel %vm308, %v513, 0
  %517 = vmatprep.subr.mxu0 0.0
  %518 = vmatpush1.msra.mxu0 0.0
  %519 = vmatprep.subr.mxu0 0.0
  %520 = vmatpush1.msra.mxu0 0.0
  %521 = vmatprep.subr.mxu0 0.0
  %522 = vmatpush1.msra.mxu0 0.0
  %523 = vmatprep.subr.mxu0 0.0
  %524 = vmatpush1.msra.mxu0 0.0
  %525 = vmatprep.subr.mxu0 0.0
  %526 = vmatpush1.msra.mxu0 0.0
  %527 = vmatprep.subr.mxu0 0.0
  %528 = vmatpush1.msra.mxu0 0.0
  %529 = vmatprep.subr.mxu0 0.0
  %530 = vmatpush1.msra.mxu0 0.0
  %531 = vmatprep.subr.mxu0 0.0
  %532 = vmatpush1.msra.mxu0 0.0
  %533 = vmatprep.subr.mxu0 0.0
  %534 = vmatpush1.msra.mxu0 %v195
  %535 = vmatprep.subr.mxu0 0.0
  %536 = vmatpush1.msra.mxu0 %v194
  %537 = vmatprep.subr.mxu0 0.0
  %538 = vmatpush1.msra.mxu0 %v193
  %539 = vmatprep.subr.mxu0 0.0
  %540 = vmatpush1.msra.mxu0 %v192
  %541 = vmatprep.subr.mxu0 0.0
  %542 = vmatpush1.msra.mxu0 %v191
  %543 = vmatprep.subr.mxu0 0.0
  %544 = vmatpush1.msra.mxu0 %v190
  %545 = vmatprep.subr.mxu0 0.0
  %546 = vmatpush1.msra.mxu0 %v189
  %547 = vmatprep.subr.mxu0 0.0
  %548 = vmatpush1.msra.mxu0 %v188
  %549 = vmatprep.subr.mxu0 0.0
  %550 = vmatpush2.msra.mxu0 0.0
  %551 = vmatprep.subr.mxu0 0.0
  %552 = vmatpush2.msra.mxu0 0.0
  %553 = vmatprep.subr.mxu0 0.0
  %554 = vmatpush2.msra.mxu0 0.0
  %555 = vmatprep.subr.mxu0 0.0
  %556 = vmatpush2.msra.mxu0 0.0
  %557 = vmatprep.subr.mxu0 0.0
  %558 = vmatpush2.msra.mxu0 0.0
  %559 = vmatprep.subr.mxu0 0.0
  %560 = vmatpush2.msra.mxu0 0.0
  %561 = vmatprep.subr.mxu0 0.0
  %562 = vmatpush2.msra.mxu0 0.0
  %563 = vmatprep.subr.mxu0 0.0
  %564 = vmatpush2.msra.mxu0 0.0
  %565 = vmatprep.subr.mxu0 0.0
  %566 = vmatpush2.msra.mxu0 0.0
  %567 = vmatprep.subr.mxu0 0.0
  %568 = vmatpush2.msra.mxu0 0.0
  %569 = vmatprep.subr.mxu0 0.0
  %570 = vmatpush2.msra.mxu0 0.0
  %571 = vmatprep.subr.mxu0 0.0
  %572 = vmatpush2.msra.mxu0 0.0
  %573 = vmatprep.subr.mxu0 0.0
  %574 = vmatpush2.msra.mxu0 0.0
  %575 = vmatprep.subr.mxu0 0.0
  %576 = vmatpush2.msra.mxu0 0.0
  %577 = vmatprep.subr.mxu0 0.0
  %578 = vmatpush2.msra.mxu0 0.0
  %579 = vmatprep.subr.mxu0 0.0
  %580 = vmatpush2.msra.mxu0 0.0
  %581 = vmatprep.mubr.f32.mxu0 0.0
  %582 = vmatmul.mubr.f32.gmra.mxu0 %v515
  %v583 = vpop.f32.mrf.mxu0
  %v584 = vadd.f32 %v306, %v583
  %v585 = vpop.f32.mrf.mxu0
  %586 = vdwg.mxu0
  %v587 = vxor.u32 %v584, 2147483648
  %v588 = vmul.f32 %v587, 1.442695
  %v589 = vpow.pop %v588
  %v590 = vadd.f32 %v589, 1.0
  %v591 = vrcp.pop %v590
  %v592 = vmul.f32 1.0, %v591
  %v593 = vtanh.pop %v584
  %v594 = vmul.f32 %v592, %v399
  %596 = vrot.lane.b32.xlu0 %v593, 64
  %v597 = vpop.permute.xlu0 %596
  %v599 = vmul.f32 %v592, %v597
  %601 = vrot.lane.b32.xlu0 %v599, 32
  %v602 = vpop.permute.xlu0 %601
  %v604 = vadd.f32 %v594, %v602
  %v605 = vtanh.pop %v604
  %607 = vrot.lane.b32.xlu0 %v605, 64
  %v608 = vpop.permute.xlu0 %607
  %v610 = vmul.f32 %v592, %v608
  %s611 = scalar_lea.vmem [#allocation2], 16
  %v612 = vld [vmem:[%s611] sm:$0xff]
  %v613 = vsel %vm198, %v507, 0
  %615 = vmatprep.subr.mxu0 0.0
  %616 = vmatpush1.msra.mxu0 0.0
  %617 = vmatprep.subr.mxu0 0.0
  %618 = vmatpush1.msra.mxu0 0.0
  %619 = vmatprep.subr.mxu0 0.0
  %620 = vmatpush1.msra.mxu0 0.0
  %621 = vmatprep.subr.mxu0 0.0
  %622 = vmatpush1.msra.mxu0 0.0
  %623 = vmatprep.subr.mxu0 0.0
  %624 = vmatpush1.msra.mxu0 0.0
  %625 = vmatprep.subr.mxu0 0.0
  %626 = vmatpush1.msra.mxu0 0.0
  %627 = vmatprep.subr.mxu0 0.0
  %628 = vmatpush1.msra.mxu0 0.0
  %629 = vmatprep.subr.mxu0 0.0
  %630 = vmatpush1.msra.mxu0 0.0
  %631 = vmatprep.subr.mxu0 0.0
  %632 = vmatpush1.msra.mxu0 0.0
  %633 = vmatprep.subr.mxu0 0.0
  %634 = vmatpush1.msra.mxu0 0.0
  %635 = vmatprep.subr.mxu0 0.0
  %636 = vmatpush1.msra.mxu0 0.0
  %637 = vmatprep.subr.mxu0 0.0
  %638 = vmatpush1.msra.mxu0 0.0
  %639 = vmatprep.subr.mxu0 0.0
  %640 = vmatpush1.msra.mxu0 %v187
  %641 = vmatprep.subr.mxu0 0.0
  %642 = vmatpush1.msra.mxu0 %v186
  %643 = vmatprep.subr.mxu0 0.0
  %644 = vmatpush1.msra.mxu0 %v185
  %645 = vmatprep.subr.mxu0 0.0
  %646 = vmatpush1.msra.mxu0 %v184
  %647 = vmatprep.subr.mxu0 0.0
  %648 = vmatpush2.msra.mxu0 0.0
  %649 = vmatprep.subr.mxu0 0.0
  %650 = vmatpush2.msra.mxu0 0.0
  %651 = vmatprep.subr.mxu0 0.0
  %652 = vmatpush2.msra.mxu0 0.0
  %653 = vmatprep.subr.mxu0 0.0
  %654 = vmatpush2.msra.mxu0 0.0
  %655 = vmatprep.subr.mxu0 0.0
  %656 = vmatpush2.msra.mxu0 0.0
  %657 = vmatprep.subr.mxu0 0.0
  %658 = vmatpush2.msra.mxu0 0.0
  %659 = vmatprep.subr.mxu0 0.0
  %660 = vmatpush2.msra.mxu0 0.0
  %661 = vmatprep.subr.mxu0 0.0
  %662 = vmatpush2.msra.mxu0 0.0
  %663 = vmatprep.subr.mxu0 0.0
  %664 = vmatpush2.msra.mxu0 0.0
  %665 = vmatprep.subr.mxu0 0.0
  %666 = vmatpush2.msra.mxu0 0.0
  %667 = vmatprep.subr.mxu0 0.0
  %668 = vmatpush2.msra.mxu0 0.0
  %669 = vmatprep.subr.mxu0 0.0
  %670 = vmatpush2.msra.mxu0 0.0
  %671 = vmatprep.subr.mxu0 0.0
  %672 = vmatpush2.msra.mxu0 0.0
  %673 = vmatprep.subr.mxu0 0.0
  %674 = vmatpush2.msra.mxu0 0.0
  %675 = vmatprep.subr.mxu0 0.0
  %676 = vmatpush2.msra.mxu0 0.0
  %677 = vmatprep.subr.mxu0 0.0
  %678 = vmatpush2.msra.mxu0 0.0
  %679 = vmatprep.mubr.f32.mxu0 0.0
  %680 = vmatmul.mubr.f32.gmra.mxu0 %v613
  %v681 = vpop.f32.mrf.mxu0
  %v682 = vadd.f32 0.0, %v681
  %v683 = vpop.f32.mrf.mxu0
  %684 = vdwg.mxu0
  %v685 = vadd.f32 %v612, %v682
  %v686 = vxor.u32 %v685, 2147483648
  %v687 = vmul.f32 %v686, 1.442695
  %v688 = vpow.pop %v687
  %v689 = vadd.f32 %v688, 1.0
  %v690 = vrcp.pop %v689
  %v691 = vmul.f32 1.0, %v690
  %v692 = vtanh.pop %v685
  %v693 = vmul.f32 %v691, %v498
  %695 = vrot.lane.b32.xlu0 %v692, 64
  %v696 = vpop.permute.xlu0 %695
  %v698 = vmul.f32 %v691, %v696
  %700 = vrot.lane.b32.xlu0 %v698, 32
  %v701 = vpop.permute.xlu0 %700
  %v703 = vadd.f32 %v693, %v701
  %v704 = vtanh.pop %v703
  %706 = vrot.lane.b32.xlu0 %v704, 64
  %v707 = vpop.permute.xlu0 %706
  %v709 = vmul.f32 %v691, %v707
  %711 = vrot.lane.b32.xlu0 %v709, 32
  %v712 = vpop.permute.xlu0 %711
  %715 = vrot.lane.b32.xlu0 %v610, 64
  %v716 = vpop.permute.xlu0 %715
  %v718 = vsel %vm198, %v712, %v716
  %v720 = vsel %vm308, %v718, 0
  %722 = vmatprep.subr.mxu0 0.0
  %723 = vmatpush1.msra.mxu0 0.0
  %724 = vmatprep.subr.mxu0 0.0
  %725 = vmatpush1.msra.mxu0 0.0
  %726 = vmatprep.subr.mxu0 0.0
  %727 = vmatpush1.msra.mxu0 0.0
  %728 = vmatprep.subr.mxu0 0.0
  %729 = vmatpush1.msra.mxu0 0.0
  %730 = vmatprep.subr.mxu0 0.0
  %731 = vmatpush1.msra.mxu0 0.0
  %732 = vmatprep.subr.mxu0 0.0
  %733 = vmatpush1.msra.mxu0 0.0
  %734 = vmatprep.subr.mxu0 0.0
  %735 = vmatpush1.msra.mxu0 0.0
  %736 = vmatprep.subr.mxu0 0.0
  %737 = vmatpush1.msra.mxu0 0.0
  %738 = vmatprep.subr.mxu0 0.0
  %739 = vmatpush1.msra.mxu0 %v195
  %740 = vmatprep.subr.mxu0 0.0
  %741 = vmatpush1.msra.mxu0 %v194
  %742 = vmatprep.subr.mxu0 0.0
  %743 = vmatpush1.msra.mxu0 %v193
  %744 = vmatprep.subr.mxu0 0.0
  %745 = vmatpush1.msra.mxu0 %v192
  %746 = vmatprep.subr.mxu0 0.0
  %747 = vmatpush1.msra.mxu0 %v191
  %748 = vmatprep.subr.mxu0 0.0
  %749 = vmatpush1.msra.mxu0 %v190
  %750 = vmatprep.subr.mxu0 0.0
  %751 = vmatpush1.msra.mxu0 %v189
  %752 = vmatprep.subr.mxu0 0.0
  %753 = vmatpush1.msra.mxu0 %v188
  %754 = vmatprep.subr.mxu0 0.0
  %755 = vmatpush2.msra.mxu0 0.0
  %756 = vmatprep.subr.mxu0 0.0
  %757 = vmatpush2.msra.mxu0 0.0
  %758 = vmatprep.subr.mxu0 0.0
  %759 = vmatpush2.msra.mxu0 0.0
  %760 = vmatprep.subr.mxu0 0.0
  %761 = vmatpush2.msra.mxu0 0.0
  %762 = vmatprep.subr.mxu0 0.0
  %763 = vmatpush2.msra.mxu0 0.0
  %764 = vmatprep.subr.mxu0 0.0
  %765 = vmatpush2.msra.mxu0 0.0
  %766 = vmatprep.subr.mxu0 0.0
  %767 = vmatpush2.msra.mxu0 0.0
  %768 = vmatprep.subr.mxu0 0.0
  %769 = vmatpush2.msra.mxu0 0.0
  %770 = vmatprep.subr.mxu0 0.0
  %771 = vmatpush2.msra.mxu0 0.0
  %772 = vmatprep.subr.mxu0 0.0
  %773 = vmatpush2.msra.mxu0 0.0
  %774 = vmatprep.subr.mxu0 0.0
  %775 = vmatpush2.msra.mxu0 0.0
  %776 = vmatprep.subr.mxu0 0.0
  %777 = vmatpush2.msra.mxu0 0.0
  %778 = vmatprep.subr.mxu0 0.0
  %779 = vmatpush2.msra.mxu0 0.0
  %780 = vmatprep.subr.mxu0 0.0
  %781 = vmatpush2.msra.mxu0 0.0
  %782 = vmatprep.subr.mxu0 0.0
  %783 = vmatpush2.msra.mxu0 0.0
  %784 = vmatprep.subr.mxu0 0.0
  %785 = vmatpush2.msra.mxu0 0.0
  %786 = vmatprep.mubr.f32.mxu0 0.0
  %787 = vmatmul.mubr.f32.gmra.mxu0 %v720
  %v788 = vpop.f32.mrf.mxu0
  %v789 = vadd.f32 %v306, %v788
  %v790 = vpop.f32.mrf.mxu0
  %791 = vdwg.mxu0
  %v792 = vxor.u32 %v789, 2147483648
  %v793 = vmul.f32 %v792, 1.442695
  %v794 = vpow.pop %v793
  %v795 = vadd.f32 %v794, 1.0
  %v796 = vrcp.pop %v795
  %v797 = vmul.f32 1.0, %v796
  %v798 = vtanh.pop %v789
  %v799 = vmul.f32 %v797, %v604
  %801 = vrot.lane.b32.xlu0 %v798, 64
  %v802 = vpop.permute.xlu0 %801
  %v804 = vmul.f32 %v797, %v802
  %806 = vrot.lane.b32.xlu0 %v804, 32
  %v807 = vpop.permute.xlu0 %806
  %v809 = vadd.f32 %v799, %v807
  %v810 = vtanh.pop %v809
  %812 = vrot.lane.b32.xlu0 %v810, 64
  %v813 = vpop.permute.xlu0 %812
  %v815 = vmul.f32 %v797, %v813
  %s816 = scalar_lea.vmem [#allocation2], 24
  %v817 = vld [vmem:[%s816] sm:$0xff]
  %v818 = vsel %vm198, %v712, 0
  %820 = vmatprep.subr.mxu0 0.0
  %821 = vmatpush1.msra.mxu0 0.0
  %822 = vmatprep.subr.mxu0 0.0
  %823 = vmatpush1.msra.mxu0 0.0
  %824 = vmatprep.subr.mxu0 0.0
  %825 = vmatpush1.msra.mxu0 0.0
  %826 = vmatprep.subr.mxu0 0.0
  %827 = vmatpush1.msra.mxu0 0.0
  %828 = vmatprep.subr.mxu0 0.0
  %829 = vmatpush1.msra.mxu0 0.0
  %830 = vmatprep.subr.mxu0 0.0
  %831 = vmatpush1.msra.mxu0 0.0
  %832 = vmatprep.subr.mxu0 0.0
  %833 = vmatpush1.msra.mxu0 0.0
  %834 = vmatprep.subr.mxu0 0.0
  %835 = vmatpush1.msra.mxu0 0.0
  %836 = vmatprep.subr.mxu0 0.0
  %837 = vmatpush1.msra.mxu0 0.0
  %838 = vmatprep.subr.mxu0 0.0
  %839 = vmatpush1.msra.mxu0 0.0
  %840 = vmatprep.subr.mxu0 0.0
  %841 = vmatpush1.msra.mxu0 0.0
  %842 = vmatprep.subr.mxu0 0.0
  %843 = vmatpush1.msra.mxu0 0.0
  %844 = vmatprep.subr.mxu0 0.0
  %845 = vmatpush1.msra.mxu0 %v187
  %846 = vmatprep.subr.mxu0 0.0
  %847 = vmatpush1.msra.mxu0 %v186
  %848 = vmatprep.subr.mxu0 0.0
  %849 = vmatpush1.msra.mxu0 %v185
  %850 = vmatprep.subr.mxu0 0.0
  %851 = vmatpush1.msra.mxu0 %v184
  %852 = vmatprep.subr.mxu0 0.0
  %853 = vmatpush2.msra.mxu0 0.0
  %854 = vmatprep.subr.mxu0 0.0
  %855 = vmatpush2.msra.mxu0 0.0
  %856 = vmatprep.subr.mxu0 0.0
  %857 = vmatpush2.msra.mxu0 0.0
  %858 = vmatprep.subr.mxu0 0.0
  %859 = vmatpush2.msra.mxu0 0.0
  %860 = vmatprep.subr.mxu0 0.0
  %861 = vmatpush2.msra.mxu0 0.0
  %862 = vmatprep.subr.mxu0 0.0
  %863 = vmatpush2.msra.mxu0 0.0
  %864 = vmatprep.subr.mxu0 0.0
  %865 = vmatpush2.msra.mxu0 0.0
  %866 = vmatprep.subr.mxu0 0.0
  %867 = vmatpush2.msra.mxu0 0.0
  %868 = vmatprep.subr.mxu0 0.0
  %869 = vmatpush2.msra.mxu0 0.0
  %870 = vmatprep.subr.mxu0 0.0
  %871 = vmatpush2.msra.mxu0 0.0
  %872 = vmatprep.subr.mxu0 0.0
  %873 = vmatpush2.msra.mxu0 0.0
  %874 = vmatprep.subr.mxu0 0.0
  %875 = vmatpush2.msra.mxu0 0.0
  %876 = vmatprep.subr.mxu0 0.0
  %877 = vmatpush2.msra.mxu0 0.0
  %878 = vmatprep.subr.mxu0 0.0
  %879 = vmatpush2.msra.mxu0 0.0
  %880 = vmatprep.subr.mxu0 0.0
  %881 = vmatpush2.msra.mxu0 0.0
  %882 = vmatprep.subr.mxu0 0.0
  %883 = vmatpush2.msra.mxu0 0.0
  %884 = vmatprep.mubr.f32.mxu0 0.0
  %885 = vmatmul.mubr.f32.gmra.mxu0 %v818
  %v886 = vpop.f32.mrf.mxu0
  %v887 = vadd.f32 0.0, %v886
  %v888 = vpop.f32.mrf.mxu0
  %889 = vdwg.mxu0
  %v890 = vadd.f32 %v817, %v887
  %v891 = vxor.u32 %v890, 2147483648
  %v892 = vmul.f32 %v891, 1.442695
  %v893 = vpow.pop %v892
  %v894 = vadd.f32 %v893, 1.0
  %v895 = vrcp.pop %v894
  %v896 = vmul.f32 1.0, %v895
  %v897 = vtanh.pop %v890
  %v898 = vmul.f32 %v896, %v703
  %900 = vrot.lane.b32.xlu0 %v897, 64
  %v901 = vpop.permute.xlu0 %900
  %v903 = vmul.f32 %v896, %v901
  %905 = vrot.lane.b32.xlu0 %v903, 32
  %v906 = vpop.permute.xlu0 %905
  %v908 = vadd.f32 %v898, %v906
  %v909 = vtanh.pop %v908
  %911 = vrot.lane.b32.xlu0 %v909, 64
  %v912 = vpop.permute.xlu0 %911
  %v914 = vmul.f32 %v896, %v912
  %916 = vrot.lane.b32.xlu0 %v914, 32
  %v917 = vpop.permute.xlu0 %916
  %920 = vrot.lane.b32.xlu0 %v815, 64
  %v921 = vpop.permute.xlu0 %920
  %v923 = vsel %vm198, %v917, %v921
  %v925 = vsel %vm308, %v923, 0
  %927 = vmatprep.subr.mxu0 0.0
  %928 = vmatpush1.msra.mxu0 0.0
  %929 = vmatprep.subr.mxu0 0.0
  %930 = vmatpush1.msra.mxu0 0.0
  %931 = vmatprep.subr.mxu0 0.0
  %932 = vmatpush1.msra.mxu0 0.0
  %933 = vmatprep.subr.mxu0 0.0
  %934 = vmatpush1.msra.mxu0 0.0
  %935 = vmatprep.subr.mxu0 0.0
  %936 = vmatpush1.msra.mxu0 0.0
  %937 = vmatprep.subr.mxu0 0.0
  %938 = vmatpush1.msra.mxu0 0.0
  %939 = vmatprep.subr.mxu0 0.0
  %940 = vmatpush1.msra.mxu0 0.0
  %941 = vmatprep.subr.mxu0 0.0
  %942 = vmatpush1.msra.mxu0 0.0
  %943 = vmatprep.subr.mxu0 0.0
  %944 = vmatpush1.msra.mxu0 %v195
  %945 = vmatprep.subr.mxu0 0.0
  %946 = vmatpush1.msra.mxu0 %v194
  %947 = vmatprep.subr.mxu0 0.0
  %948 = vmatpush1.msra.mxu0 %v193
  %949 = vmatprep.subr.mxu0 0.0
  %950 = vmatpush1.msra.mxu0 %v192
  %951 = vmatprep.subr.mxu0 0.0
  %952 = vmatpush1.msra.mxu0 %v191
  %953 = vmatprep.subr.mxu0 0.0
  %954 = vmatpush1.msra.mxu0 %v190
  %955 = vmatprep.subr.mxu0 0.0
  %956 = vmatpush1.msra.mxu0 %v189
  %957 = vmatprep.subr.mxu0 0.0
  %958 = vmatpush1.msra.mxu0 %v188
  %959 = vmatprep.subr.mxu0 0.0
  %960 = vmatpush2.msra.mxu0 0.0
  %961 = vmatprep.subr.mxu0 0.0
  %962 = vmatpush2.msra.mxu0 0.0
  %963 = vmatprep.subr.mxu0 0.0
  %964 = vmatpush2.msra.mxu0 0.0
  %965 = vmatprep.subr.mxu0 0.0
  %966 = vmatpush2.msra.mxu0 0.0
  %967 = vmatprep.subr.mxu0 0.0
  %968 = vmatpush2.msra.mxu0 0.0
  %969 = vmatprep.subr.mxu0 0.0
  %970 = vmatpush2.msra.mxu0 0.0
  %971 = vmatprep.subr.mxu0 0.0
  %972 = vmatpush2.msra.mxu0 0.0
  %973 = vmatprep.subr.mxu0 0.0
  %974 = vmatpush2.msra.mxu0 0.0
  %975 = vmatprep.subr.mxu0 0.0
  %976 = vmatpush2.msra.mxu0 0.0
  %977 = vmatprep.subr.mxu0 0.0
  %978 = vmatpush2.msra.mxu0 0.0
  %979 = vmatprep.subr.mxu0 0.0
  %980 = vmatpush2.msra.mxu0 0.0
  %981 = vmatprep.subr.mxu0 0.0
  %982 = vmatpush2.msra.mxu0 0.0
  %983 = vmatprep.subr.mxu0 0.0
  %984 = vmatpush2.msra.mxu0 0.0
  %985 = vmatprep.subr.mxu0 0.0
  %986 = vmatpush2.msra.mxu0 0.0
  %987 = vmatprep.subr.mxu0 0.0
  %988 = vmatpush2.msra.mxu0 0.0
  %989 = vmatprep.subr.mxu0 0.0
  %990 = vmatpush2.msra.mxu0 0.0
  %991 = vmatprep.mubr.f32.mxu0 0.0
  %992 = vmatmul.mubr.f32.gmra.mxu0 %v925
  %v993 = vpop.f32.mrf.mxu0
  %v994 = vadd.f32 %v306, %v993
  %v995 = vpop.f32.mrf.mxu0
  %996 = vdwg.mxu0
  %v997 = vxor.u32 %v994, 2147483648
  %v998 = vmul.f32 %v997, 1.442695
  %v999 = vpow.pop %v998
  %v1000 = vadd.f32 %v999, 1.0
  %v1001 = vrcp.pop %v1000
  %v1002 = vmul.f32 1.0, %v1001
  %v1003 = vtanh.pop %v994
  %v1004 = vmul.f32 %v1002, %v809
  %1006 = vrot.lane.b32.xlu0 %v1003, 64
  %v1007 = vpop.permute.xlu0 %1006
  %v1009 = vmul.f32 %v1002, %v1007
  %1011 = vrot.lane.b32.xlu0 %v1009, 32
  %v1012 = vpop.permute.xlu0 %1011
  %v1014 = vadd.f32 %v1004, %v1012
  %v1015 = vtanh.pop %v1014
  %1017 = vrot.lane.b32.xlu0 %v1015, 64
  %v1018 = vpop.permute.xlu0 %1017
  %v1020 = vmul.f32 %v1002, %v1018
  %s1021 = scalar_lea.vmem [#allocation2], 32
  %v1022 = vld [vmem:[%s1021] sm:$0xff]
  %v1023 = vsel %vm198, %v917, 0
  %1025 = vmatprep.subr.mxu0 0.0
  %1026 = vmatpush1.msra.mxu0 0.0
  %1027 = vmatprep.subr.mxu0 0.0
  %1028 = vmatpush1.msra.mxu0 0.0
  %1029 = vmatprep.subr.mxu0 0.0
  %1030 = vmatpush1.msra.mxu0 0.0
  %1031 = vmatprep.subr.mxu0 0.0
  %1032 = vmatpush1.msra.mxu0 0.0
  %1033 = vmatprep.subr.mxu0 0.0
  %1034 = vmatpush1.msra.mxu0 0.0
  %1035 = vmatprep.subr.mxu0 0.0
  %1036 = vmatpush1.msra.mxu0 0.0
  %1037 = vmatprep.subr.mxu0 0.0
  %1038 = vmatpush1.msra.mxu0 0.0
  %1039 = vmatprep.subr.mxu0 0.0
  %1040 = vmatpush1.msra.mxu0 0.0
  %1041 = vmatprep.subr.mxu0 0.0
  %1042 = vmatpush1.msra.mxu0 0.0
  %1043 = vmatprep.subr.mxu0 0.0
  %1044 = vmatpush1.msra.mxu0 0.0
  %1045 = vmatprep.subr.mxu0 0.0
  %1046 = vmatpush1.msra.mxu0 0.0
  %1047 = vmatprep.subr.mxu0 0.0
  %1048 = vmatpush1.msra.mxu0 0.0
  %1049 = vmatprep.subr.mxu0 0.0
  %1050 = vmatpush1.msra.mxu0 %v187
  %1051 = vmatprep.subr.mxu0 0.0
  %1052 = vmatpush1.msra.mxu0 %v186
  %1053 = vmatprep.subr.mxu0 0.0
  %1054 = vmatpush1.msra.mxu0 %v185
  %1055 = vmatprep.subr.mxu0 0.0
  %1056 = vmatpush1.msra.mxu0 %v184
  %1057 = vmatprep.subr.mxu0 0.0
  %1058 = vmatpush2.msra.mxu0 0.0
  %1059 = vmatprep.subr.mxu0 0.0
  %1060 = vmatpush2.msra.mxu0 0.0
  %1061 = vmatprep.subr.mxu0 0.0
  %1062 = vmatpush2.msra.mxu0 0.0
  %1063 = vmatprep.subr.mxu0 0.0
  %1064 = vmatpush2.msra.mxu0 0.0
  %1065 = vmatprep.subr.mxu0 0.0
  %1066 = vmatpush2.msra.mxu0 0.0
  %1067 = vmatprep.subr.mxu0 0.0
  %1068 = vmatpush2.msra.mxu0 0.0
  %1069 = vmatprep.subr.mxu0 0.0
  %1070 = vmatpush2.msra.mxu0 0.0
  %1071 = vmatprep.subr.mxu0 0.0
  %1072 = vmatpush2.msra.mxu0 0.0
  %1073 = vmatprep.subr.mxu0 0.0
  %1074 = vmatpush2.msra.mxu0 0.0
  %1075 = vmatprep.subr.mxu0 0.0
  %1076 = vmatpush2.msra.mxu0 0.0
  %1077 = vmatprep.subr.mxu0 0.0
  %1078 = vmatpush2.msra.mxu0 0.0
  %1079 = vmatprep.subr.mxu0 0.0
  %1080 = vmatpush2.msra.mxu0 0.0
  %1081 = vmatprep.subr.mxu0 0.0
  %1082 = vmatpush2.msra.mxu0 0.0
  %1083 = vmatprep.subr.mxu0 0.0
  %1084 = vmatpush2.msra.mxu0 0.0
  %1085 = vmatprep.subr.mxu0 0.0
  %1086 = vmatpush2.msra.mxu0 0.0
  %1087 = vmatprep.subr.mxu0 0.0
  %1088 = vmatpush2.msra.mxu0 0.0
  %1089 = vmatprep.mubr.f32.mxu0 0.0
  %1090 = vmatmul.mubr.f32.gmra.mxu0 %v1023
  %v1091 = vpop.f32.mrf.mxu0
  %v1092 = vadd.f32 0.0, %v1091
  %v1093 = vpop.f32.mrf.mxu0
  %1094 = vdwg.mxu0
  %v1095 = vadd.f32 %v1022, %v1092
  %v1096 = vxor.u32 %v1095, 2147483648
  %v1097 = vmul.f32 %v1096, 1.442695
  %v1098 = vpow.pop %v1097
  %v1099 = vadd.f32 %v1098, 1.0
  %v1100 = vrcp.pop %v1099
  %v1101 = vmul.f32 1.0, %v1100
  %v1102 = vtanh.pop %v1095
  %v1103 = vmul.f32 %v1101, %v908
  %1105 = vrot.lane.b32.xlu0 %v1102, 64
  %v1106 = vpop.permute.xlu0 %1105
  %v1108 = vmul.f32 %v1101, %v1106
  %1110 = vrot.lane.b32.xlu0 %v1108, 32
  %v1111 = vpop.permute.xlu0 %1110
  %v1113 = vadd.f32 %v1103, %v1111
  %v1114 = vtanh.pop %v1113
  %1116 = vrot.lane.b32.xlu0 %v1114, 64
  %v1117 = vpop.permute.xlu0 %1116
  %v1119 = vmul.f32 %v1101, %v1117
  %1121 = vrot.lane.b32.xlu0 %v1119, 32
  %v1122 = vpop.permute.xlu0 %1121
  %1125 = vrot.lane.b32.xlu0 %v1020, 64
  %v1126 = vpop.permute.xlu0 %1125
  %v1128 = vsel %vm198, %v1122, %v1126
  %v1130 = vsel %vm308, %v1128, 0
  %1132 = vmatprep.subr.mxu0 0.0
  %1133 = vmatpush1.msra.mxu0 0.0
  %1134 = vmatprep.subr.mxu0 0.0
  %1135 = vmatpush1.msra.mxu0 0.0
  %1136 = vmatprep.subr.mxu0 0.0
  %1137 = vmatpush1.msra.mxu0 0.0
  %1138 = vmatprep.subr.mxu0 0.0
  %1139 = vmatpush1.msra.mxu0 0.0
  %1140 = vmatprep.subr.mxu0 0.0
  %1141 = vmatpush1.msra.mxu0 0.0
  %1142 = vmatprep.subr.mxu0 0.0
  %1143 = vmatpush1.msra.mxu0 0.0
  %1144 = vmatprep.subr.mxu0 0.0
  %1145 = vmatpush1.msra.mxu0 0.0
  %1146 = vmatprep.subr.mxu0 0.0
  %1147 = vmatpush1.msra.mxu0 0.0
  %1148 = vmatprep.subr.mxu0 0.0
  %1149 = vmatpush1.msra.mxu0 %v195
  %1150 = vmatprep.subr.mxu0 0.0
  %1151 = vmatpush1.msra.mxu0 %v194
  %1152 = vmatprep.subr.mxu0 0.0
  %1153 = vmatpush1.msra.mxu0 %v193
  %1154 = vmatprep.subr.mxu0 0.0
  %1155 = vmatpush1.msra.mxu0 %v192
  %1156 = vmatprep.subr.mxu0 0.0
  %1157 = vmatpush1.msra.mxu0 %v191
  %1158 = vmatprep.subr.mxu0 0.0
  %1159 = vmatpush1.msra.mxu0 %v190
  %1160 = vmatprep.subr.mxu0 0.0
  %1161 = vmatpush1.msra.mxu0 %v189
  %1162 = vmatprep.subr.mxu0 0.0
  %1163 = vmatpush1.msra.mxu0 %v188
  %1164 = vmatprep.subr.mxu0 0.0
  %1165 = vmatpush2.msra.mxu0 0.0
  %1166 = vmatprep.subr.mxu0 0.0
  %1167 = vmatpush2.msra.mxu0 0.0
  %1168 = vmatprep.subr.mxu0 0.0
  %1169 = vmatpush2.msra.mxu0 0.0
  %1170 = vmatprep.subr.mxu0 0.0
  %1171 = vmatpush2.msra.mxu0 0.0
  %1172 = vmatprep.subr.mxu0 0.0
  %1173 = vmatpush2.msra.mxu0 0.0
  %1174 = vmatprep.subr.mxu0 0.0
  %1175 = vmatpush2.msra.mxu0 0.0
  %1176 = vmatprep.subr.mxu0 0.0
  %1177 = vmatpush2.msra.mxu0 0.0
  %1178 = vmatprep.subr.mxu0 0.0
  %1179 = vmatpush2.msra.mxu0 0.0
  %1180 = vmatprep.subr.mxu0 0.0
  %1181 = vmatpush2.msra.mxu0 0.0
  %1182 = vmatprep.subr.mxu0 0.0
  %1183 = vmatpush2.msra.mxu0 0.0
  %1184 = vmatprep.subr.mxu0 0.0
  %1185 = vmatpush2.msra.mxu0 0.0
  %1186 = vmatprep.subr.mxu0 0.0
  %1187 = vmatpush2.msra.mxu0 0.0
  %1188 = vmatprep.subr.mxu0 0.0
  %1189 = vmatpush2.msra.mxu0 0.0
  %1190 = vmatprep.subr.mxu0 0.0
  %1191 = vmatpush2.msra.mxu0 0.0
  %1192 = vmatprep.subr.mxu0 0.0
  %1193 = vmatpush2.msra.mxu0 0.0
  %1194 = vmatprep.subr.mxu0 0.0
  %1195 = vmatpush2.msra.mxu0 0.0
  %1196 = vmatprep.mubr.f32.mxu0 0.0
  %1197 = vmatmul.mubr.f32.gmra.mxu0 %v1130
  %v1198 = vpop.f32.mrf.mxu0
  %v1199 = vadd.f32 %v306, %v1198
  %v1200 = vpop.f32.mrf.mxu0
  %1201 = vdwg.mxu0
  %v1202 = vxor.u32 %v1199, 2147483648
  %v1203 = vmul.f32 %v1202, 1.442695
  %v1204 = vpow.pop %v1203
  %v1205 = vadd.f32 %v1204, 1.0
  %v1206 = vrcp.pop %v1205
  %v1207 = vmul.f32 1.0, %v1206
  %v1208 = vtanh.pop %v1199
  %v1209 = vmul.f32 %v1207, %v1014
  %1211 = vrot.lane.b32.xlu0 %v1208, 64
  %v1212 = vpop.permute.xlu0 %1211
  %v1214 = vmul.f32 %v1207, %v1212
  %1216 = vrot.lane.b32.xlu0 %v1214, 32
  %v1217 = vpop.permute.xlu0 %1216
  %v1219 = vadd.f32 %v1209, %v1217
  %v1220 = vtanh.pop %v1219
  %1222 = vrot.lane.b32.xlu0 %v1220, 64
  %v1223 = vpop.permute.xlu0 %1222
  %v1225 = vmul.f32 %v1207, %v1223
  %s1226 = scalar_lea.vmem [#allocation2], 40
  %v1227 = vld [vmem:[%s1226] sm:$0xff]
  %v1228 = vsel %vm198, %v1122, 0
  %1230 = vmatprep.subr.mxu0 0.0
  %1231 = vmatpush1.msra.mxu0 0.0
  %1232 = vmatprep.subr.mxu0 0.0
  %1233 = vmatpush1.msra.mxu0 0.0
  %1234 = vmatprep.subr.mxu0 0.0
  %1235 = vmatpush1.msra.mxu0 0.0
  %1236 = vmatprep.subr.mxu0 0.0
  %1237 = vmatpush1.msra.mxu0 0.0
  %1238 = vmatprep.subr.mxu0 0.0
  %1239 = vmatpush1.msra.mxu0 0.0
  %1240 = vmatprep.subr.mxu0 0.0
  %1241 = vmatpush1.msra.mxu0 0.0
  %1242 = vmatprep.subr.mxu0 0.0
  %1243 = vmatpush1.msra.mxu0 0.0
  %1244 = vmatprep.subr.mxu0 0.0
  %1245 = vmatpush1.msra.mxu0 0.0
  %1246 = vmatprep.subr.mxu0 0.0
  %1247 = vmatpush1.msra.mxu0 0.0
  %1248 = vmatprep.subr.mxu0 0.0
  %1249 = vmatpush1.msra.mxu0 0.0
  %1250 = vmatprep.subr.mxu0 0.0
  %1251 = vmatpush1.msra.mxu0 0.0
  %1252 = vmatprep.subr.mxu0 0.0
  %1253 = vmatpush1.msra.mxu0 0.0
  %1254 = vmatprep.subr.mxu0 0.0
  %1255 = vmatpush1.msra.mxu0 %v187
  %1256 = vmatprep.subr.mxu0 0.0
  %1257 = vmatpush1.msra.mxu0 %v186
  %1258 = vmatprep.subr.mxu0 0.0
  %1259 = vmatpush1.msra.mxu0 %v185
  %1260 = vmatprep.subr.mxu0 0.0
  %1261 = vmatpush1.msra.mxu0 %v184
  %1262 = vmatprep.subr.mxu0 0.0
  %1263 = vmatpush2.msra.mxu0 0.0
  %1264 = vmatprep.subr.mxu0 0.0
  %1265 = vmatpush2.msra.mxu0 0.0
  %1266 = vmatprep.subr.mxu0 0.0
  %1267 = vmatpush2.msra.mxu0 0.0
  %1268 = vmatprep.subr.mxu0 0.0
  %1269 = vmatpush2.msra.mxu0 0.0
  %1270 = vmatprep.subr.mxu0 0.0
  %1271 = vmatpush2.msra.mxu0 0.0
  %1272 = vmatprep.subr.mxu0 0.0
  %1273 = vmatpush2.msra.mxu0 0.0
  %1274 = vmatprep.subr.mxu0 0.0
  %1275 = vmatpush2.msra.mxu0 0.0
  %1276 = vmatprep.subr.mxu0 0.0
  %1277 = vmatpush2.msra.mxu0 0.0
  %1278 = vmatprep.subr.mxu0 0.0
  %1279 = vmatpush2.msra.mxu0 0.0
  %1280 = vmatprep.subr.mxu0 0.0
  %1281 = vmatpush2.msra.mxu0 0.0
  %1282 = vmatprep.subr.mxu0 0.0
  %1283 = vmatpush2.msra.mxu0 0.0
  %1284 = vmatprep.subr.mxu0 0.0
  %1285 = vmatpush2.msra.mxu0 0.0
  %1286 = vmatprep.subr.mxu0 0.0
  %1287 = vmatpush2.msra.mxu0 0.0
  %1288 = vmatprep.subr.mxu0 0.0
  %1289 = vmatpush2.msra.mxu0 0.0
  %1290 = vmatprep.subr.mxu0 0.0
  %1291 = vmatpush2.msra.mxu0 0.0
  %1292 = vmatprep.subr.mxu0 0.0
  %1293 = vmatpush2.msra.mxu0 0.0
  %1294 = vmatprep.mubr.f32.mxu0 0.0
  %1295 = vmatmul.mubr.f32.gmra.mxu0 %v1228
  %v1296 = vpop.f32.mrf.mxu0
  %v1297 = vadd.f32 0.0, %v1296
  %v1298 = vpop.f32.mrf.mxu0
  %1299 = vdwg.mxu0
  %v1300 = vadd.f32 %v1227, %v1297
  %v1301 = vxor.u32 %v1300, 2147483648
  %v1302 = vmul.f32 %v1301, 1.442695
  %v1303 = vpow.pop %v1302
  %v1304 = vadd.f32 %v1303, 1.0
  %v1305 = vrcp.pop %v1304
  %v1306 = vmul.f32 1.0, %v1305
  %v1307 = vtanh.pop %v1300
  %v1308 = vmul.f32 %v1306, %v1113
  %1310 = vrot.lane.b32.xlu0 %v1307, 64
  %v1311 = vpop.permute.xlu0 %1310
  %v1313 = vmul.f32 %v1306, %v1311
  %1315 = vrot.lane.b32.xlu0 %v1313, 32
  %v1316 = vpop.permute.xlu0 %1315
  %v1318 = vadd.f32 %v1308, %v1316
  %v1319 = vtanh.pop %v1318
  %1321 = vrot.lane.b32.xlu0 %v1319, 64
  %v1322 = vpop.permute.xlu0 %1321
  %v1324 = vmul.f32 %v1306, %v1322
  %1326 = vrot.lane.b32.xlu0 %v1324, 32
  %v1327 = vpop.permute.xlu0 %1326
  %1330 = vrot.lane.b32.xlu0 %v1225, 64
  %v1331 = vpop.permute.xlu0 %1330
  %v1333 = vsel %vm198, %v1327, %v1331
  %v1335 = vsel %vm308, %v1333, 0
  %1337 = vmatprep.subr.mxu0 0.0
  %1338 = vmatpush1.msra.mxu0 0.0
  %1339 = vmatprep.subr.mxu0 0.0
  %1340 = vmatpush1.msra.mxu0 0.0
  %1341 = vmatprep.subr.mxu0 0.0
  %1342 = vmatpush1.msra.mxu0 0.0
  %1343 = vmatprep.subr.mxu0 0.0
  %1344 = vmatpush1.msra.mxu0 0.0
  %1345 = vmatprep.subr.mxu0 0.0
  %1346 = vmatpush1.msra.mxu0 0.0
  %1347 = vmatprep.subr.mxu0 0.0
  %1348 = vmatpush1.msra.mxu0 0.0
  %1349 = vmatprep.subr.mxu0 0.0
  %1350 = vmatpush1.msra.mxu0 0.0
  %1351 = vmatprep.subr.mxu0 0.0
  %1352 = vmatpush1.msra.mxu0 0.0
  %1353 = vmatprep.subr.mxu0 0.0
  %1354 = vmatpush1.msra.mxu0 %v195
  %1355 = vmatprep.subr.mxu0 0.0
  %1356 = vmatpush1.msra.mxu0 %v194
  %1357 = vmatprep.subr.mxu0 0.0
  %1358 = vmatpush1.msra.mxu0 %v193
  %1359 = vmatprep.subr.mxu0 0.0
  %1360 = vmatpush1.msra.mxu0 %v192
  %1361 = vmatprep.subr.mxu0 0.0
  %1362 = vmatpush1.msra.mxu0 %v191
  %1363 = vmatprep.subr.mxu0 0.0
  %1364 = vmatpush1.msra.mxu0 %v190
  %1365 = vmatprep.subr.mxu0 0.0
  %1366 = vmatpush1.msra.mxu0 %v189
  %1367 = vmatprep.subr.mxu0 0.0
  %1368 = vmatpush1.msra.mxu0 %v188
  %1369 = vmatprep.subr.mxu0 0.0
  %1370 = vmatpush2.msra.mxu0 0.0
  %1371 = vmatprep.subr.mxu0 0.0
  %1372 = vmatpush2.msra.mxu0 0.0
  %1373 = vmatprep.subr.mxu0 0.0
  %1374 = vmatpush2.msra.mxu0 0.0
  %1375 = vmatprep.subr.mxu0 0.0
  %1376 = vmatpush2.msra.mxu0 0.0
  %1377 = vmatprep.subr.mxu0 0.0
  %1378 = vmatpush2.msra.mxu0 0.0
  %1379 = vmatprep.subr.mxu0 0.0
  %1380 = vmatpush2.msra.mxu0 0.0
  %1381 = vmatprep.subr.mxu0 0.0
  %1382 = vmatpush2.msra.mxu0 0.0
  %1383 = vmatprep.subr.mxu0 0.0
  %1384 = vmatpush2.msra.mxu0 0.0
  %1385 = vmatprep.subr.mxu0 0.0
  %1386 = vmatpush2.msra.mxu0 0.0
  %1387 = vmatprep.subr.mxu0 0.0
  %1388 = vmatpush2.msra.mxu0 0.0
  %1389 = vmatprep.subr.mxu0 0.0
  %1390 = vmatpush2.msra.mxu0 0.0
  %1391 = vmatprep.subr.mxu0 0.0
  %1392 = vmatpush2.msra.mxu0 0.0
  %1393 = vmatprep.subr.mxu0 0.0
  %1394 = vmatpush2.msra.mxu0 0.0
  %1395 = vmatprep.subr.mxu0 0.0
  %1396 = vmatpush2.msra.mxu0 0.0
  %1397 = vmatprep.subr.mxu0 0.0
  %1398 = vmatpush2.msra.mxu0 0.0
  %1399 = vmatprep.subr.mxu0 0.0
  %1400 = vmatpush2.msra.mxu0 0.0
  %1401 = vmatprep.mubr.f32.mxu0 0.0
  %1402 = vmatmul.mubr.f32.gmra.mxu0 %v1335
  %v1403 = vpop.f32.mrf.mxu0
  %v1404 = vadd.f32 %v306, %v1403
  %v1405 = vpop.f32.mrf.mxu0
  %1406 = vdwg.mxu0
  %v1407 = vxor.u32 %v1404, 2147483648
  %v1408 = vmul.f32 %v1407, 1.442695
  %v1409 = vpow.pop %v1408
  %v1410 = vadd.f32 %v1409, 1.0
  %v1411 = vrcp.pop %v1410
  %v1412 = vmul.f32 1.0, %v1411
  %v1413 = vtanh.pop %v1404
  %v1414 = vmul.f32 %v1412, %v1219
  %1416 = vrot.lane.b32.xlu0 %v1413, 64
  %v1417 = vpop.permute.xlu0 %1416
  %v1419 = vmul.f32 %v1412, %v1417
  %1421 = vrot.lane.b32.xlu0 %v1419, 32
  %v1422 = vpop.permute.xlu0 %1421
  %v1424 = vadd.f32 %v1414, %v1422
  %v1425 = vtanh.pop %v1424
  %1427 = vrot.lane.b32.xlu0 %v1425, 64
  %v1428 = vpop.permute.xlu0 %1427
  %v1430 = vmul.f32 %v1412, %v1428
  %s1431 = scalar_lea.vmem [#allocation2], 48
  %v1432 = vld [vmem:[%s1431] sm:$0xff]
  %v1433 = vsel %vm198, %v1327, 0
  %1435 = vmatprep.subr.mxu0 0.0
  %1436 = vmatpush1.msra.mxu0 0.0
  %1437 = vmatprep.subr.mxu0 0.0
  %1438 = vmatpush1.msra.mxu0 0.0
  %1439 = vmatprep.subr.mxu0 0.0
  %1440 = vmatpush1.msra.mxu0 0.0
  %1441 = vmatprep.subr.mxu0 0.0
  %1442 = vmatpush1.msra.mxu0 0.0
  %1443 = vmatprep.subr.mxu0 0.0
  %1444 = vmatpush1.msra.mxu0 0.0
  %1445 = vmatprep.subr.mxu0 0.0
  %1446 = vmatpush1.msra.mxu0 0.0
  %1447 = vmatprep.subr.mxu0 0.0
  %1448 = vmatpush1.msra.mxu0 0.0
  %1449 = vmatprep.subr.mxu0 0.0
  %1450 = vmatpush1.msra.mxu0 0.0
  %1451 = vmatprep.subr.mxu0 0.0
  %1452 = vmatpush1.msra.mxu0 0.0
  %1453 = vmatprep.subr.mxu0 0.0
  %1454 = vmatpush1.msra.mxu0 0.0
  %1455 = vmatprep.subr.mxu0 0.0
  %1456 = vmatpush1.msra.mxu0 0.0
  %1457 = vmatprep.subr.mxu0 0.0
  %1458 = vmatpush1.msra.mxu0 0.0
  %1459 = vmatprep.subr.mxu0 0.0
  %1460 = vmatpush1.msra.mxu0 %v187
  %1461 = vmatprep.subr.mxu0 0.0
  %1462 = vmatpush1.msra.mxu0 %v186
  %1463 = vmatprep.subr.mxu0 0.0
  %1464 = vmatpush1.msra.mxu0 %v185
  %1465 = vmatprep.subr.mxu0 0.0
  %1466 = vmatpush1.msra.mxu0 %v184
  %1467 = vmatprep.subr.mxu0 0.0
  %1468 = vmatpush2.msra.mxu0 0.0
  %1469 = vmatprep.subr.mxu0 0.0
  %1470 = vmatpush2.msra.mxu0 0.0
  %1471 = vmatprep.subr.mxu0 0.0
  %1472 = vmatpush2.msra.mxu0 0.0
  %1473 = vmatprep.subr.mxu0 0.0
  %1474 = vmatpush2.msra.mxu0 0.0
  %1475 = vmatprep.subr.mxu0 0.0
  %1476 = vmatpush2.msra.mxu0 0.0
  %1477 = vmatprep.subr.mxu0 0.0
  %1478 = vmatpush2.msra.mxu0 0.0
  %1479 = vmatprep.subr.mxu0 0.0
  %1480 = vmatpush2.msra.mxu0 0.0
  %1481 = vmatprep.subr.mxu0 0.0
  %1482 = vmatpush2.msra.mxu0 0.0
  %1483 = vmatprep.subr.mxu0 0.0
  %1484 = vmatpush2.msra.mxu0 0.0
  %1485 = vmatprep.subr.mxu0 0.0
  %1486 = vmatpush2.msra.mxu0 0.0
  %1487 = vmatprep.subr.mxu0 0.0
  %1488 = vmatpush2.msra.mxu0 0.0
  %1489 = vmatprep.subr.mxu0 0.0
  %1490 = vmatpush2.msra.mxu0 0.0
  %1491 = vmatprep.subr.mxu0 0.0
  %1492 = vmatpush2.msra.mxu0 0.0
  %1493 = vmatprep.subr.mxu0 0.0
  %1494 = vmatpush2.msra.mxu0 0.0
  %1495 = vmatprep.subr.mxu0 0.0
  %1496 = vmatpush2.msra.mxu0 0.0
  %1497 = vmatprep.subr.mxu0 0.0
  %1498 = vmatpush2.msra.mxu0 0.0
  %1499 = vmatprep.mubr.f32.mxu0 0.0
  %1500 = vmatmul.mubr.f32.gmra.mxu0 %v1433
  %v1501 = vpop.f32.mrf.mxu0
  %v1502 = vadd.f32 0.0, %v1501
  %v1503 = vpop.f32.mrf.mxu0
  %1504 = vdwg.mxu0
  %v1505 = vadd.f32 %v1432, %v1502
  %v1506 = vxor.u32 %v1505, 2147483648
  %v1507 = vmul.f32 %v1506, 1.442695
  %v1508 = vpow.pop %v1507
  %v1509 = vadd.f32 %v1508, 1.0
  %v1510 = vrcp.pop %v1509
  %v1511 = vmul.f32 1.0, %v1510
  %v1512 = vtanh.pop %v1505
  %v1513 = vmul.f32 %v1511, %v1318
  %1515 = vrot.lane.b32.xlu0 %v1512, 64
  %v1516 = vpop.permute.xlu0 %1515
  %v1518 = vmul.f32 %v1511, %v1516
  %1520 = vrot.lane.b32.xlu0 %v1518, 32
  %v1521 = vpop.permute.xlu0 %1520
  %v1523 = vadd.f32 %v1513, %v1521
  %v1524 = vtanh.pop %v1523
  %1526 = vrot.lane.b32.xlu0 %v1524, 64
  %v1527 = vpop.permute.xlu0 %1526
  %v1529 = vmul.f32 %v1511, %v1527
  %1531 = vrot.lane.b32.xlu0 %v1529, 32
  %v1532 = vpop.permute.xlu0 %1531
  %1535 = vrot.lane.b32.xlu0 %v1430, 64
  %v1536 = vpop.permute.xlu0 %1535
  %v1538 = vsel %vm198, %v1532, %v1536
  %v1540 = vsel %vm308, %v1538, 0
  %1542 = vmatprep.subr.mxu0 0.0
  %1543 = vmatpush1.msra.mxu0 0.0
  %1544 = vmatprep.subr.mxu0 0.0
  %1545 = vmatpush1.msra.mxu0 0.0
  %1546 = vmatprep.subr.mxu0 0.0
  %1547 = vmatpush1.msra.mxu0 0.0
  %1548 = vmatprep.subr.mxu0 0.0
  %1549 = vmatpush1.msra.mxu0 0.0
  %1550 = vmatprep.subr.mxu0 0.0
  %1551 = vmatpush1.msra.mxu0 0.0
  %1552 = vmatprep.subr.mxu0 0.0
  %1553 = vmatpush1.msra.mxu0 0.0
  %1554 = vmatprep.subr.mxu0 0.0
  %1555 = vmatpush1.msra.mxu0 0.0
  %1556 = vmatprep.subr.mxu0 0.0
  %1557 = vmatpush1.msra.mxu0 0.0
  %1558 = vmatprep.subr.mxu0 0.0
  %1559 = vmatpush1.msra.mxu0 %v195
  %1560 = vmatprep.subr.mxu0 0.0
  %1561 = vmatpush1.msra.mxu0 %v194
  %1562 = vmatprep.subr.mxu0 0.0
  %1563 = vmatpush1.msra.mxu0 %v193
  %1564 = vmatprep.subr.mxu0 0.0
  %1565 = vmatpush1.msra.mxu0 %v192
  %1566 = vmatprep.subr.mxu0 0.0
  %1567 = vmatpush1.msra.mxu0 %v191
  %1568 = vmatprep.subr.mxu0 0.0
  %1569 = vmatpush1.msra.mxu0 %v190
  %1570 = vmatprep.subr.mxu0 0.0
  %1571 = vmatpush1.msra.mxu0 %v189
  %1572 = vmatprep.subr.mxu0 0.0
  %1573 = vmatpush1.msra.mxu0 %v188
  %1574 = vmatprep.subr.mxu0 0.0
  %1575 = vmatpush2.msra.mxu0 0.0
  %1576 = vmatprep.subr.mxu0 0.0
  %1577 = vmatpush2.msra.mxu0 0.0
  %1578 = vmatprep.subr.mxu0 0.0
  %1579 = vmatpush2.msra.mxu0 0.0
  %1580 = vmatprep.subr.mxu0 0.0
  %1581 = vmatpush2.msra.mxu0 0.0
  %1582 = vmatprep.subr.mxu0 0.0
  %1583 = vmatpush2.msra.mxu0 0.0
  %1584 = vmatprep.subr.mxu0 0.0
  %1585 = vmatpush2.msra.mxu0 0.0
  %1586 = vmatprep.subr.mxu0 0.0
  %1587 = vmatpush2.msra.mxu0 0.0
  %1588 = vmatprep.subr.mxu0 0.0
  %1589 = vmatpush2.msra.mxu0 0.0
  %1590 = vmatprep.subr.mxu0 0.0
  %1591 = vmatpush2.msra.mxu0 0.0
  %1592 = vmatprep.subr.mxu0 0.0
  %1593 = vmatpush2.msra.mxu0 0.0
  %1594 = vmatprep.subr.mxu0 0.0
  %1595 = vmatpush2.msra.mxu0 0.0
  %1596 = vmatprep.subr.mxu0 0.0
  %1597 = vmatpush2.msra.mxu0 0.0
  %1598 = vmatprep.subr.mxu0 0.0
  %1599 = vmatpush2.msra.mxu0 0.0
  %1600 = vmatprep.subr.mxu0 0.0
  %1601 = vmatpush2.msra.mxu0 0.0
  %1602 = vmatprep.subr.mxu0 0.0
  %1603 = vmatpush2.msra.mxu0 0.0
  %1604 = vmatprep.subr.mxu0 0.0
  %1605 = vmatpush2.msra.mxu0 0.0
  %1606 = vmatprep.mubr.f32.mxu0 0.0
  %1607 = vmatmul.mubr.f32.gmra.mxu0 %v1540
  %v1608 = vpop.f32.mrf.mxu0
  %v1609 = vadd.f32 %v306, %v1608
  %v1610 = vpop.f32.mrf.mxu0
  %1611 = vdwg.mxu0
  %v1612 = vxor.u32 %v1609, 2147483648
  %v1613 = vmul.f32 %v1612, 1.442695
  %v1614 = vpow.pop %v1613
  %v1615 = vadd.f32 %v1614, 1.0
  %v1616 = vrcp.pop %v1615
  %v1617 = vmul.f32 1.0, %v1616
  %v1618 = vtanh.pop %v1609
  %v1619 = vmul.f32 %v1617, %v1424
  %1621 = vrot.lane.b32.xlu0 %v1618, 64
  %v1622 = vpop.permute.xlu0 %1621
  %v1624 = vmul.f32 %v1617, %v1622
  %1626 = vrot.lane.b32.xlu0 %v1624, 32
  %v1627 = vpop.permute.xlu0 %1626
  %v1629 = vadd.f32 %v1619, %v1627
  %v1630 = vtanh.pop %v1629
  %1632 = vrot.lane.b32.xlu0 %v1630, 64
  %v1633 = vpop.permute.xlu0 %1632
  %v1635 = vmul.f32 %v1617, %v1633
  %s1636 = scalar_lea.vmem [#allocation2], 56
  %v1637 = vld [vmem:[%s1636] sm:$0xff]
  %v1638 = vsel %vm198, %v1532, 0
  %1640 = vmatprep.subr.mxu0 0.0
  %1641 = vmatpush1.msra.mxu0 0.0
  %1642 = vmatprep.subr.mxu0 0.0
  %1643 = vmatpush1.msra.mxu0 0.0
  %1644 = vmatprep.subr.mxu0 0.0
  %1645 = vmatpush1.msra.mxu0 0.0
  %1646 = vmatprep.subr.mxu0 0.0
  %1647 = vmatpush1.msra.mxu0 0.0
  %1648 = vmatprep.subr.mxu0 0.0
  %1649 = vmatpush1.msra.mxu0 0.0
  %1650 = vmatprep.subr.mxu0 0.0
  %1651 = vmatpush1.msra.mxu0 0.0
  %1652 = vmatprep.subr.mxu0 0.0
  %1653 = vmatpush1.msra.mxu0 0.0
  %1654 = vmatprep.subr.mxu0 0.0
  %1655 = vmatpush1.msra.mxu0 0.0
  %1656 = vmatprep.subr.mxu0 0.0
  %1657 = vmatpush1.msra.mxu0 0.0
  %1658 = vmatprep.subr.mxu0 0.0
  %1659 = vmatpush1.msra.mxu0 0.0
  %1660 = vmatprep.subr.mxu0 0.0
  %1661 = vmatpush1.msra.mxu0 0.0
  %1662 = vmatprep.subr.mxu0 0.0
  %1663 = vmatpush1.msra.mxu0 0.0
  %1664 = vmatprep.subr.mxu0 0.0
  %1665 = vmatpush1.msra.mxu0 %v187
  %1666 = vmatprep.subr.mxu0 0.0
  %1667 = vmatpush1.msra.mxu0 %v186
  %1668 = vmatprep.subr.mxu0 0.0
  %1669 = vmatpush1.msra.mxu0 %v185
  %1670 = vmatprep.subr.mxu0 0.0
  %1671 = vmatpush1.msra.mxu0 %v184
  %1672 = vmatprep.subr.mxu0 0.0
  %1673 = vmatpush2.msra.mxu0 0.0
  %1674 = vmatprep.subr.mxu0 0.0
  %1675 = vmatpush2.msra.mxu0 0.0
  %1676 = vmatprep.subr.mxu0 0.0
  %1677 = vmatpush2.msra.mxu0 0.0
  %1678 = vmatprep.subr.mxu0 0.0
  %1679 = vmatpush2.msra.mxu0 0.0
  %1680 = vmatprep.subr.mxu0 0.0
  %1681 = vmatpush2.msra.mxu0 0.0
  %1682 = vmatprep.subr.mxu0 0.0
  %1683 = vmatpush2.msra.mxu0 0.0
  %1684 = vmatprep.subr.mxu0 0.0
  %1685 = vmatpush2.msra.mxu0 0.0
  %1686 = vmatprep.subr.mxu0 0.0
  %1687 = vmatpush2.msra.mxu0 0.0
  %1688 = vmatprep.subr.mxu0 0.0
  %1689 = vmatpush2.msra.mxu0 0.0
  %1690 = vmatprep.subr.mxu0 0.0
  %1691 = vmatpush2.msra.mxu0 0.0
  %1692 = vmatprep.subr.mxu0 0.0
  %1693 = vmatpush2.msra.mxu0 0.0
  %1694 = vmatprep.subr.mxu0 0.0
  %1695 = vmatpush2.msra.mxu0 0.0
  %1696 = vmatprep.subr.mxu0 0.0
  %1697 = vmatpush2.msra.mxu0 0.0
  %1698 = vmatprep.subr.mxu0 0.0
  %1699 = vmatpush2.msra.mxu0 0.0
  %1700 = vmatprep.subr.mxu0 0.0
  %1701 = vmatpush2.msra.mxu0 0.0
  %1702 = vmatprep.subr.mxu0 0.0
  %1703 = vmatpush2.msra.mxu0 0.0
  %1704 = vmatprep.mubr.f32.mxu0 0.0
  %1705 = vmatmul.mubr.f32.gmra.mxu0 %v1638
  %v1706 = vpop.f32.mrf.mxu0
  %v1707 = vadd.f32 0.0, %v1706
  %v1708 = vpop.f32.mrf.mxu0
  %1709 = vdwg.mxu0
  %v1710 = vadd.f32 %v1637, %v1707
  %v1711 = vxor.u32 %v1710, 2147483648
  %v1712 = vmul.f32 %v1711, 1.442695
  %v1713 = vpow.pop %v1712
  %v1714 = vadd.f32 %v1713, 1.0
  %v1715 = vrcp.pop %v1714
  %v1716 = vmul.f32 1.0, %v1715
  %v1717 = vtanh.pop %v1710
  %v1718 = vmul.f32 %v1716, %v1523
  %1720 = vrot.lane.b32.xlu0 %v1717, 64
  %v1721 = vpop.permute.xlu0 %1720
  %v1723 = vmul.f32 %v1716, %v1721
  %1725 = vrot.lane.b32.xlu0 %v1723, 32
  %v1726 = vpop.permute.xlu0 %1725
  %v1728 = vadd.f32 %v1718, %v1726
  %v1729 = vtanh.pop %v1728
  %1731 = vrot.lane.b32.xlu0 %v1729, 64
  %v1732 = vpop.permute.xlu0 %1731
  %v1734 = vmul.f32 %v1716, %v1732
  %1736 = vrot.lane.b32.xlu0 %v1734, 32
  %v1737 = vpop.permute.xlu0 %1736
  %1740 = vrot.lane.b32.xlu0 %v1635, 64
  %v1741 = vpop.permute.xlu0 %1740
  %v1743 = vsel %vm198, %v1737, %v1741
  %v1745 = vsel %vm308, %v1743, 0
  %1747 = vmatprep.subr.mxu0 0.0
  %1748 = vmatpush1.msra.mxu0 0.0
  %1749 = vmatprep.subr.mxu0 0.0
  %1750 = vmatpush1.msra.mxu0 0.0
  %1751 = vmatprep.subr.mxu0 0.0
  %1752 = vmatpush1.msra.mxu0 0.0
  %1753 = vmatprep.subr.mxu0 0.0
  %1754 = vmatpush1.msra.mxu0 0.0
  %1755 = vmatprep.subr.mxu0 0.0
  %1756 = vmatpush1.msra.mxu0 0.0
  %1757 = vmatprep.subr.mxu0 0.0
  %1758 = vmatpush1.msra.mxu0 0.0
  %1759 = vmatprep.subr.mxu0 0.0
  %1760 = vmatpush1.msra.mxu0 0.0
  %1761 = vmatprep.subr.mxu0 0.0
  %1762 = vmatpush1.msra.mxu0 0.0
  %1763 = vmatprep.subr.mxu0 0.0
  %1764 = vmatpush1.msra.mxu0 %v195
  %1765 = vmatprep.subr.mxu0 0.0
  %1766 = vmatpush1.msra.mxu0 %v194
  %1767 = vmatprep.subr.mxu0 0.0
  %1768 = vmatpush1.msra.mxu0 %v193
  %1769 = vmatprep.subr.mxu0 0.0
  %1770 = vmatpush1.msra.mxu0 %v192
  %1771 = vmatprep.subr.mxu0 0.0
  %1772 = vmatpush1.msra.mxu0 %v191
  %1773 = vmatprep.subr.mxu0 0.0
  %1774 = vmatpush1.msra.mxu0 %v190
  %1775 = vmatprep.subr.mxu0 0.0
  %1776 = vmatpush1.msra.mxu0 %v189
  %1777 = vmatprep.subr.mxu0 0.0
  %1778 = vmatpush1.msra.mxu0 %v188
  %1779 = vmatprep.subr.mxu0 0.0
  %1780 = vmatpush2.msra.mxu0 0.0
  %1781 = vmatprep.subr.mxu0 0.0
  %1782 = vmatpush2.msra.mxu0 0.0
  %1783 = vmatprep.subr.mxu0 0.0
  %1784 = vmatpush2.msra.mxu0 0.0
  %1785 = vmatprep.subr.mxu0 0.0
  %1786 = vmatpush2.msra.mxu0 0.0
  %1787 = vmatprep.subr.mxu0 0.0
  %1788 = vmatpush2.msra.mxu0 0.0
  %1789 = vmatprep.subr.mxu0 0.0
  %1790 = vmatpush2.msra.mxu0 0.0
  %1791 = vmatprep.subr.mxu0 0.0
  %1792 = vmatpush2.msra.mxu0 0.0
  %1793 = vmatprep.subr.mxu0 0.0
  %1794 = vmatpush2.msra.mxu0 0.0
  %1795 = vmatprep.subr.mxu0 0.0
  %1796 = vmatpush2.msra.mxu0 0.0
  %1797 = vmatprep.subr.mxu0 0.0
  %1798 = vmatpush2.msra.mxu0 0.0
  %1799 = vmatprep.subr.mxu0 0.0
  %1800 = vmatpush2.msra.mxu0 0.0
  %1801 = vmatprep.subr.mxu0 0.0
  %1802 = vmatpush2.msra.mxu0 0.0
  %1803 = vmatprep.subr.mxu0 0.0
  %1804 = vmatpush2.msra.mxu0 0.0
  %1805 = vmatprep.subr.mxu0 0.0
  %1806 = vmatpush2.msra.mxu0 0.0
  %1807 = vmatprep.subr.mxu0 0.0
  %1808 = vmatpush2.msra.mxu0 0.0
  %1809 = vmatprep.subr.mxu0 0.0
  %1810 = vmatpush2.msra.mxu0 0.0
  %1811 = vmatprep.mubr.f32.mxu0 0.0
  %1812 = vmatmul.mubr.f32.gmra.mxu0 %v1745
  %v1813 = vpop.f32.mrf.mxu0
  %v1814 = vadd.f32 %v306, %v1813
  %v1815 = vpop.f32.mrf.mxu0
  %1816 = vdwg.mxu0
  %v1817 = vxor.u32 %v1814, 2147483648
  %v1818 = vmul.f32 %v1817, 1.442695
  %v1819 = vpow.pop %v1818
  %v1820 = vadd.f32 %v1819, 1.0
  %v1821 = vrcp.pop %v1820
  %v1822 = vmul.f32 1.0, %v1821
  %v1823 = vtanh.pop %v1814
  %v1824 = vmul.f32 %v1822, %v1629
  %1826 = vrot.lane.b32.xlu0 %v1823, 64
  %v1827 = vpop.permute.xlu0 %1826
  %v1829 = vmul.f32 %v1822, %v1827
  %1831 = vrot.lane.b32.xlu0 %v1829, 32
  %v1832 = vpop.permute.xlu0 %1831
  %v1834 = vadd.f32 %v1824, %v1832
  %v1835 = vtanh.pop %v1834
  %1837 = vrot.lane.b32.xlu0 %v1835, 64
  %v1838 = vpop.permute.xlu0 %1837
  %v1840 = vmul.f32 %v1822, %v1838
  %v1841 = vld [vmem:[%s6] sm:$0xff]
  %v1842 = vld [vmem:[%s6 + $0x8] sm:$0xff]
  %v1843 = vld [vmem:[%s6 + $0x10] sm:$0xff]
  %v1844 = vld [vmem:[%s6 + $0x18] sm:$0xff]
  %v1845 = vld [vmem:[%s7] sm:$0x1]
  %v1847 = vlaneseq
  %v1848 = vshrl.u32 %v1847, 7
  %v1849 = vsub.s32 0, %v1848
  %v1850 = vrot.slane %v1845, %v1849
  %1853 = vrot.lane.b32.xlu0 %v1840, 32
  %v1854 = vpop.permute.xlu0 %1853
  %v1855 = vsel %vm198, %v1854, 0
  %1857 = vmatprep.subr.mxu0 0.0
  %1858 = vmatpush1.msra.mxu0 0.0
  %1859 = vmatprep.subr.mxu0 0.0
  %1860 = vmatpush1.msra.mxu0 0.0
  %1861 = vmatprep.subr.mxu0 0.0
  %1862 = vmatpush1.msra.mxu0 0.0
  %1863 = vmatprep.subr.mxu0 0.0
  %1864 = vmatpush1.msra.mxu0 0.0
  %1865 = vmatprep.subr.mxu0 0.0
  %1866 = vmatpush1.msra.mxu0 0.0
  %1867 = vmatprep.subr.mxu0 0.0
  %1868 = vmatpush1.msra.mxu0 0.0
  %1869 = vmatprep.subr.mxu0 0.0
  %1870 = vmatpush1.msra.mxu0 0.0
  %1871 = vmatprep.subr.mxu0 0.0
  %1872 = vmatpush1.msra.mxu0 0.0
  %1873 = vmatprep.subr.mxu0 0.0
  %1874 = vmatpush1.msra.mxu0 0.0
  %1875 = vmatprep.subr.mxu0 0.0
  %1876 = vmatpush1.msra.mxu0 0.0
  %1877 = vmatprep.subr.mxu0 0.0
  %1878 = vmatpush1.msra.mxu0 0.0
  %1879 = vmatprep.subr.mxu0 0.0
  %1880 = vmatpush1.msra.mxu0 0.0
  %1881 = vmatprep.subr.mxu0 0.0
  %1882 = vmatpush1.msra.mxu0 %v1844
  %1883 = vmatprep.subr.mxu0 0.0
  %1884 = vmatpush1.msra.mxu0 %v1843
  %1885 = vmatprep.subr.mxu0 0.0
  %1886 = vmatpush1.msra.mxu0 %v1842
  %1887 = vmatprep.subr.mxu0 0.0
  %1888 = vmatpush1.msra.mxu0 %v1841
  %1889 = vmatprep.subr.mxu0 0.0
  %1890 = vmatpush2.msra.mxu0 0.0
  %1891 = vmatprep.subr.mxu0 0.0
  %1892 = vmatpush2.msra.mxu0 0.0
  %1893 = vmatprep.subr.mxu0 0.0
  %1894 = vmatpush2.msra.mxu0 0.0
  %1895 = vmatprep.subr.mxu0 0.0
  %1896 = vmatpush2.msra.mxu0 0.0
  %1897 = vmatprep.subr.mxu0 0.0
  %1898 = vmatpush2.msra.mxu0 0.0
  %1899 = vmatprep.subr.mxu0 0.0
  %1900 = vmatpush2.msra.mxu0 0.0
  %1901 = vmatprep.subr.mxu0 0.0
  %1902 = vmatpush2.msra.mxu0 0.0
  %1903 = vmatprep.subr.mxu0 0.0
  %1904 = vmatpush2.msra.mxu0 0.0
  %1905 = vmatprep.subr.mxu0 0.0
  %1906 = vmatpush2.msra.mxu0 0.0
  %1907 = vmatprep.subr.mxu0 0.0
  %1908 = vmatpush2.msra.mxu0 0.0
  %1909 = vmatprep.subr.mxu0 0.0
  %1910 = vmatpush2.msra.mxu0 0.0
  %1911 = vmatprep.subr.mxu0 0.0
  %1912 = vmatpush2.msra.mxu0 0.0
  %1913 = vmatprep.subr.mxu0 0.0
  %1914 = vmatpush2.msra.mxu0 0.0
  %1915 = vmatprep.subr.mxu0 0.0
  %1916 = vmatpush2.msra.mxu0 0.0
  %1917 = vmatprep.subr.mxu0 0.0
  %1918 = vmatpush2.msra.mxu0 0.0
  %1919 = vmatprep.subr.mxu0 0.0
  %1920 = vmatpush2.msra.mxu0 0.0
  %1921 = vmatprep.mubr.f32.mxu0 0.0
  %1922 = vmatmul.mubr.f32.gmra.mxu0 %v1855
  %v1923 = vpop.f32.mrf.mxu0
  %v1924 = vadd.f32 %v1850, %v1923
  %v1925 = vpop.f32.mrf.mxu0
  %1926 = vdwg.mxu0
  %vm1927 = vcmask 31744
  %1928 = vst.msk [vmem:[%s8] sm:$0xff] %vm1927, %v1924
  // Predicated region
  $region34: #{tpu_custom_call.1} parent=0 // pred_check
    _
  $region35: #{tpu_custom_call.1} parent=0 // pred_check_branch
    %1930 = sbr.rel (0) target = $region37
  $region36: #{tpu_custom_call.1} parent=0 // pred_region
    _
  $region37: #{tpu_custom_call.1} parent=0 // pred_fallthru
    _
  // Predicated region
  $region38: #{tpu_custom_call.1} parent=0 // pred_check
    _
  $region39: #{tpu_custom_call.1} parent=0 // pred_check_branch
    %1932 = sbr.rel (0) target = $region41
  $region40: #{tpu_custom_call.1} parent=0 // pred_region
    _
  $region41: #{tpu_custom_call.1} parent=0 // pred_fallthru
    _

</llo_original>
